<compile_context>
chip_gen: v6e
topology: v6e:2x2x1
jax: 0.10.0
libtpu: 0.0.40
codegen_flags: <defaults>
</compile_context>

<pallas_src>
import functools

import jax
import jax.numpy as jnp
from jax import lax
from jax.experimental import pallas as pl
from jax.experimental.pallas import tpu as pltpu


def _round_up(x, m):
    return (x + m - 1) // m * m


# ----------------------------------------------------------------------------
# Pallas kernel: fused (patches @ W) + bias + activation
# ----------------------------------------------------------------------------
def _matmul_bias_act_kernel(x_ref, w_ref, b_ref, o_ref, *, act):
    # bf16 x bf16 -> f32 accumulate on the MXU.
    y = jnp.dot(x_ref[...], w_ref[...], preferred_element_type=jnp.float32)
    y = y + b_ref[...]          # f32 epilogue (v5e VPU/EUP have no bf16 path)
    if act == "relu":
        y = jnp.maximum(y, 0.0)
    elif act == "sigmoid":
        y = jax.nn.sigmoid(y)
    o_ref[...] = y.astype(o_ref.dtype)


# Target M tile: large enough to amortize per-grid-step overhead and approach
# the HBM roofline, small enough that double-buffered bf16 patch tiles +
# resident weights fit comfortably inside a 64 MiB (v7x) VMEM budget.
_TM_TARGET = 512


def matmul_bias_act(patches, w_mat, bias, act):
    """patches: (M, K) f32, w_mat: (K, Cout) f32, bias: (1, Cout) f32 -> (M, Cout) f32."""
    M, K = patches.shape
    Kw, Cout = w_mat.shape
    assert K == Kw

    # Lane-dense padding: K and Cout -> multiples of 128 (zero rows/cols are
    # inert; padded output columns are sliced off afterwards).
    Kp = _round_up(K, 128)
    Cp = _round_up(Cout, 128)

    # M tiling: never a single giant block at large M; pad M to a tile multiple.
    tm = min(_TM_TARGET, _round_up(M, 8))
    Mp = _round_up(M, tm)
    grid = (Mp // tm,)

    # bf16 operands before the pallas_call (halves DMA); bias stays f32.
    x_p = jnp.pad(patches, ((0, Mp - M), (0, Kp - K))).astype(jnp.bfloat16)
    w_p = jnp.pad(w_mat, ((0, Kp - K), (0, Cp - Cout))).astype(jnp.bfloat16)
    b_p = jnp.pad(bias, ((0, 0), (0, Cp - Cout))).astype(jnp.float32)

    out = pl.pallas_call(
        functools.partial(_matmul_bias_act_kernel, act=act),
        out_shape=jax.ShapeDtypeStruct((Mp, Cp), jnp.float32),
        grid_spec=pltpu.PrefetchScalarGridSpec(
            num_scalar_prefetch=0,
            grid=grid,
            in_specs=[
                pl.BlockSpec((tm, Kp), lambda i: (i, 0)),
                pl.BlockSpec((Kp, Cp), lambda i: (0, 0)),  # resident weights
                pl.BlockSpec((1, Cp), lambda i: (0, 0)),   # resident bias
            ],
            out_specs=pl.BlockSpec((tm, Cp), lambda i: (i, 0)),
        ),
        compiler_params=pltpu.CompilerParams(
            dimension_semantics=("parallel",),          # megacore-shards the M grid
            vmem_limit_bytes=48 * 1024 * 1024,          # headroom below v7x 64 MiB
        ),
    )(x_p, w_p, b_p)
    return out[:M, :Cout]


# ----------------------------------------------------------------------------
# Glue: im2col (k=2, stride=1 only paths are used), NHWC internally
# ----------------------------------------------------------------------------
def _im2col(x, k, stride):
    """x: (N, H, W, C) -> ((N*oh*ow, k*k*C), oh, ow); K order = (kh, kw, c)."""
    N, H, W, C = x.shape
    oh = (H - k) // stride + 1
    ow = (W - k) // stride + 1
    cols = []
    for kh in range(k):
        for kw in range(k):
            cols.append(
                x[:, kh:kh + stride * (oh - 1) + 1:stride,
                     kw:kw + stride * (ow - 1) + 1:stride, :]
            )
    patches = jnp.stack(cols, axis=3)          # (N, oh, ow, k*k, C)
    return patches.reshape(N * oh * ow, k * k * C), oh, ow


def conv4x4s2p1(x_nhwc, w_oihw, bias, act):
    """torch.nn.Conv2d(Cin, Cout, kernel_size=4, stride=2, padding=1) + act.

    Lowered via space-to-depth(2) of the padded input: the k=4/s=2 conv becomes
    a stride-1 2x2 conv over super-pixels (same K = 16*Cin, 4x less im2col).
    """
    N, H, W, Cin = x_nhwc.shape
    Cout = w_oihw.shape[0]
    assert H % 2 == 0 and W % 2 == 0

    xp = jnp.pad(x_nhwc, ((0, 0), (1, 1), (1, 1), (0, 0)))       # (N, H+2, W+2, Cin)
    Hp, Wp = H + 2, W + 2
    # space-to-depth(2): channel order (dy, dx, ci)
    xs = (xp.reshape(N, Hp // 2, 2, Wp // 2, 2, Cin)
            .transpose(0, 1, 3, 2, 4, 5)
            .reshape(N, Hp // 2, Wp // 2, 4 * Cin))

    patches, oh, ow = _im2col(xs, 2, 1)        # oh = H//2, ow = W//2; K=(j,i,dy,dx,ci)

    # weight (Cout, Cin, kh, kw), kh = 2*j + dy, kw = 2*i + dx
    w_r = jnp.transpose(w_oihw, (2, 3, 1, 0))                     # (kh, kw, Cin, Cout)
    w6 = w_r.reshape(2, 2, 2, 2, Cin, Cout)                       # [j, dy, i, dx, ci, co]
    w_mat = jnp.transpose(w6, (0, 2, 1, 3, 4, 5)).reshape(16 * Cin, Cout)

    out = matmul_bias_act(patches, w_mat, bias.reshape(1, Cout), act)
    return out.reshape(N, oh, ow, Cout)


def convT4x4s2p1(x_nhwc, w_iohw, bias, act):
    """torch.nn.ConvTranspose2d(Cin, Cout, kernel_size=4, stride=2, padding=1) + act.

    Sub-pixel decomposition: each output parity (ry, rx) in {0,1}^2 is a
    stride-1 2x2 conv of the (pad-1) input with a 2x2 sub-kernel
    (kh = 3 - ry - 2*j, kw = 3 - rx - 2*i).  All four parities are computed in
    ONE matmul with 4*Cout output channels, then pixel-shuffled.
    """
    N, H, W, Cin = x_nhwc.shape
    Cout = w_iohw.shape[1]

    xp = jnp.pad(x_nhwc, ((0, 0), (1, 1), (1, 1), (0, 0)))        # (N, H+2, W+2, Cin)
    patches, oh, ow = _im2col(xp, 2, 1)        # oh = H+1, ow = W+1; K order (j, i, ci)

    # weight (Cin, Cout, kh, kw) -> matrix [(j, i, ci), (ry, rx, co)]
    w_r = jnp.transpose(w_iohw, (2, 3, 0, 1))                     # (kh, kw, Cin, Cout)
    w_flip = w_r[::-1, ::-1]                                      # [a,b] = w_r[3-a, 3-b]
    w6 = w_flip.reshape(2, 2, 2, 2, Cin, Cout)                    # [j, ry, i, rx, ci, co]
    w_mat = jnp.transpose(w6, (0, 2, 4, 1, 3, 5)).reshape(4 * Cin, 4 * Cout)
    b_mat = jnp.tile(bias, 4).reshape(1, 4 * Cout)                # (ry, rx, co) order

    z = matmul_bias_act(patches, w_mat, b_mat, act)
    z = z.reshape(N, H + 1, W + 1, 2, 2, Cout)

    # pixel-shuffle gather: y[n, 2m+ry, 2l+rx, co] = z[n, m+ry, l+rx, ry, rx, co]
    rows = []
    for ry in range(2):
        cols = [z[:, ry:ry + H, rx:rx + W, ry, rx, :] for rx in range(2)]
        rows.append(jnp.stack(cols, axis=3))                      # (N, H, W, 2, Cout)
    y6 = jnp.stack(rows, axis=3)                                  # (N, H, W, ry, rx, Cout)
    return jnp.transpose(y6, (0, 1, 3, 2, 4, 5)).reshape(N, 2 * H, 2 * W, Cout)


# ----------------------------------------------------------------------------
# VITONHD parameters & forward
# ----------------------------------------------------------------------------
def init_params(key):
    ks = jax.random.split(key, 8)
    s = 0.05
    return {
        # encoder: Conv2d(6->64,k4,s2,p1)+ReLU ; Conv2d(64->128,k4,s2,p1)+ReLU
        "enc1_w": jax.random.normal(ks[0], (64, 6, 4, 4), jnp.float32) * s,
        "enc1_b": jax.random.normal(ks[1], (64,), jnp.float32) * s,
        "enc2_w": jax.random.normal(ks[2], (128, 64, 4, 4), jnp.float32) * s,
        "enc2_b": jax.random.normal(ks[3], (128,), jnp.float32) * s,
        # decoder: ConvT(128->64,k4,s2,p1)+ReLU ; ConvT(64->3,k4,s2,p1)+Sigmoid
        # torch ConvTranspose2d weight layout: (Cin, Cout, kH, kW)
        "dec1_w": jax.random.normal(ks[4], (128, 64, 4, 4), jnp.float32) * s,
        "dec1_b": jax.random.normal(ks[5], (64,), jnp.float32) * s,
        "dec2_w": jax.random.normal(ks[6], (64, 3, 4, 4), jnp.float32) * s,
        "dec2_b": jax.random.normal(ks[7], (3,), jnp.float32) * s,
    }


def vitonhd_forward(params, x_nchw):
    x = jnp.transpose(x_nchw, (0, 2, 3, 1))  # NCHW -> NHWC
    h = conv4x4s2p1(x, params["enc1_w"], params["enc1_b"], act="relu")
    h = conv4x4s2p1(h, params["enc2_w"], params["enc2_b"], act="relu")
    h = convT4x4s2p1(h, params["dec1_w"], params["dec1_b"], act="relu")
    h = convT4x4s2p1(h, params["dec2_w"], params["dec2_b"], act="sigmoid")
    return jnp.transpose(h, (0, 3, 1, 2))    # NHWC -> NCHW


# ----------------------------------------------------------------------------
# Pure-XLA f32 reference (lax.conv_general_dilated) for correctness check
# ----------------------------------------------------------------------------
def vitonhd_reference(params, x_nchw):
    dn = ("NCHW", "OIHW", "NCHW")

    def conv(x, w, b, stride, pad):
        y = lax.conv_general_dilated(x, w, (stride, stride),
                                     [(pad, pad), (pad, pad)],
                                     dimension_numbers=dn)
        return y + b[None, :, None, None]

    def convT(x, w_iohw, b, stride, pad):
        w_eq = jnp.transpose(w_iohw[:, :, ::-1, ::-1], (1, 0, 2, 3))
        k = w_iohw.shape[-1]
        y = lax.conv_general_dilated(x, w_eq, (1, 1),
                                     [(k - 1 - pad,) * 2, (k - 1 - pad,) * 2],
                                     lhs_dilation=(stride, stride),
                                     dimension_numbers=dn)
        return y + b[None, :, None, None]

    h = jax.nn.relu(conv(x_nchw, params["enc1_w"], params["enc1_b"], 2, 1))
    h = jax.nn.relu(conv(h, params["enc2_w"], params["enc2_b"], 2, 1))
    h = jax.nn.relu(convT(h, params["dec1_w"], params["dec1_b"], 2, 1))
    h = jax.nn.sigmoid(convT(h, params["dec2_w"], params["dec2_b"], 2, 1))
    return h


if __name__ == "__main__":
    key = jax.random.PRNGKey(0)
    pkey, xkey = jax.random.split(key)
    params = init_params(pkey)

    # person + clothing concatenated -> 6 input channels, NCHW like PyTorch
    x = jax.random.normal(xkey, (2, 6, 16, 16), jnp.float32)

    out = jax.jit(vitonhd_forward)(params, x)
    out = jax.block_until_ready(out)

    assert out.shape == (2, 3, 16, 16), out.shape
    assert bool(jnp.all(jnp.isfinite(out)))
    assert bool(jnp.all((out >= 0.0) & (out <= 1.0)))  # sigmoid output range

    # f32 XLA reference; tolerance loosened because the Pallas path uses bf16
    # MXU operands (f32 accumulation).
    ref = jax.block_until_ready(vitonhd_reference(params, x))
    max_err = float(jnp.max(jnp.abs(out - ref)))
    assert bool(jnp.allclose(out, ref, atol=3e-2, rtol=3e-2)), max_err

    print("KERNEL_OK")
</pallas_src>

<mosaic_0001>
module attributes {stable_mosaic.version = 11 : i64} {
  func.func @_matmul_bias_act_kernel(%arg0: i32, %arg1: memref<128x128xbf16, #tpu.memory_space<vmem>>, %arg2: memref<128x128xbf16, #tpu.memory_space<vmem>>, %arg3: memref<1x128xf32, #tpu.memory_space<vmem>>, %arg4: memref<128x128xf32, #tpu.memory_space<vmem>>) attributes {dimension_semantics = [#tpu.dimension_semantics<parallel>], iteration_bounds = array<i64: 1>, scalar_prefetch = 0 : i64, scratch_operands = 0 : i64, tpu.core_type = #tpu.core_type<tc>, window_params = [{transform_indices = @transform_0, window_bounds = array<i64: 128, 128>}, {pipeline_mode = #tpu.pipeline_mode<synchronous>, transform_indices = @transform_1, window_bounds = array<i64: 128, 128>}, {pipeline_mode = #tpu.pipeline_mode<synchronous>, transform_indices = @transform_2, window_bounds = array<i64: 1, 128>}, {transform_indices = @transform_3, window_bounds = array<i64: 128, 128>}]} {
    %c0 = arith.constant 0 : index
    %c0_0 = arith.constant 0 : index
    %0 = vector.load %arg1[%c0, %c0_0] : memref<128x128xbf16, #tpu.memory_space<vmem>>, vector<128x128xbf16>
    %c0_1 = arith.constant 0 : index
    %c0_2 = arith.constant 0 : index
    %1 = vector.load %arg2[%c0_1, %c0_2] : memref<128x128xbf16, #tpu.memory_space<vmem>>, vector<128x128xbf16>
    %cst = arith.constant dense<0.000000e+00> : vector<128x128xf32>
    %2 = tpu.matmul %0, %1, %cst {dimension_numbers = #tpu.dot_dimension_numbers<[1], [0], [0], [1], [0, 0, 1, 1], [], []>} : vector<128x128xbf16>, vector<128x128xbf16>, vector<128x128xf32> -> vector<128x128xf32>
    %c0_3 = arith.constant 0 : index
    %c0_4 = arith.constant 0 : index
    %3 = vector.load %arg3[%c0_3, %c0_4] : memref<1x128xf32, #tpu.memory_space<vmem>>, vector<1x128xf32>
    %4 = vector.broadcast %3 : vector<1x128xf32> to vector<128x128xf32>
    %5 = arith.addf %2, %4 : vector<128x128xf32>
    %cst_5 = arith.constant 0.000000e+00 : f32
    %6 = vector.broadcast %cst_5 : f32 to vector<128x128xf32>
    %7 = arith.maximumf %5, %6 : vector<128x128xf32>
    %c0_6 = arith.constant 0 : index
    %c0_7 = arith.constant 0 : index
    %8 = vector.load %arg4[%c0_6, %c0_7] : memref<128x128xf32, #tpu.memory_space<vmem>>, vector<128x128xf32>
    tpu.vector_store %arg4[%c0_6, %c0_7], %7 {strides = array<i32>} : memref<128x128xf32, #tpu.memory_space<vmem>>, vector<128x128xf32>,
    return
  }
  func.func @transform_0(%arg0: i32) -> (i32, i32) {
    %c0_i32 = arith.constant 0 : i32
    %c0_i32_0 = arith.constant 0 : i32
    return %arg0, %c0_i32 : i32, i32
  }
  func.func @transform_1(%arg0: i32) -> (i32, i32) {
    %c0_i32 = arith.constant 0 : i32
    %c0_i32_0 = arith.constant 0 : i32
    %c0_i32_1 = arith.constant 0 : i32
    return %c0_i32, %c0_i32_0 : i32, i32
  }
  func.func @transform_2(%arg0: i32) -> (i32, i32) {
    %c0_i32 = arith.constant 0 : i32
    %c0_i32_0 = arith.constant 0 : i32
    %c0_i32_1 = arith.constant 0 : i32
    return %c0_i32, %c0_i32_0 : i32, i32
  }
  func.func @transform_3(%arg0: i32) -> (i32, i32) {
    %c0_i32 = arith.constant 0 : i32
    %c0_i32_0 = arith.constant 0 : i32
    return %arg0, %c0_i32 : i32, i32
  }
}

module attributes {stable_mosaic.version = 11 : i64} {
  func.func @_matmul_bias_act_kernel(%arg0: i32, %arg1: memref<32x1024xbf16, #tpu.memory_space<vmem>>, %arg2: memref<1024x128xbf16, #tpu.memory_space<vmem>>, %arg3: memref<1x128xf32, #tpu.memory_space<vmem>>, %arg4: memref<32x128xf32, #tpu.memory_space<vmem>>) attributes {dimension_semantics = [#tpu.dimension_semantics<parallel>], iteration_bounds = array<i64: 1>, scalar_prefetch = 0 : i64, scratch_operands = 0 : i64, tpu.core_type = #tpu.core_type<tc>, window_params = [{transform_indices = @transform_0, window_bounds = array<i64: 32, 1024>}, {pipeline_mode = #tpu.pipeline_mode<synchronous>, transform_indices = @transform_1, window_bounds = array<i64: 1024, 128>}, {pipeline_mode = #tpu.pipeline_mode<synchronous>, transform_indices = @transform_2, window_bounds = array<i64: 1, 128>}, {transform_indices = @transform_3, window_bounds = array<i64: 32, 128>}]} {
    %c0 = arith.constant 0 : index
    %c0_0 = arith.constant 0 : index
    %0 = vector.load %arg1[%c0, %c0_0] : memref<32x1024xbf16, #tpu.memory_space<vmem>>, vector<32x1024xbf16>
    %c0_1 = arith.constant 0 : index
    %c0_2 = arith.constant 0 : index
    %1 = vector.load %arg2[%c0_1, %c0_2] : memref<1024x128xbf16, #tpu.memory_space<vmem>>, vector<1024x128xbf16>
    %cst = arith.constant dense<0.000000e+00> : vector<32x128xf32>
    %2 = tpu.matmul %0, %1, %cst {dimension_numbers = #tpu.dot_dimension_numbers<[1], [0], [0], [1], [0, 0, 1, 1], [], []>} : vector<32x1024xbf16>, vector<1024x128xbf16>, vector<32x128xf32> -> vector<32x128xf32>
    %c0_3 = arith.constant 0 : index
    %c0_4 = arith.constant 0 : index
    %3 = vector.load %arg3[%c0_3, %c0_4] : memref<1x128xf32, #tpu.memory_space<vmem>>, vector<1x128xf32>
    %4 = vector.broadcast %3 : vector<1x128xf32> to vector<32x128xf32>
    %5 = arith.addf %2, %4 : vector<32x128xf32>
    %cst_5 = arith.constant 0.000000e+00 : f32
    %6 = vector.broadcast %cst_5 : f32 to vector<32x128xf32>
    %7 = arith.maximumf %5, %6 : vector<32x128xf32>
    %c0_6 = arith.constant 0 : index
    %c0_7 = arith.constant 0 : index
    %8 = vector.load %arg4[%c0_6, %c0_7] : memref<32x128xf32, #tpu.memory_space<vmem>>, vector<32x128xf32>
    tpu.vector_store %arg4[%c0_6, %c0_7], %7 {strides = array<i32>} : memref<32x128xf32, #tpu.memory_space<vmem>>, vector<32x128xf32>,
    return
  }
  func.func @transform_0(%arg0: i32) -> (i32, i32) {
    %c0_i32 = arith.constant 0 : i32
    %c0_i32_0 = arith.constant 0 : i32
    return %arg0, %c0_i32 : i32, i32
  }
  func.func @transform_1(%arg0: i32) -> (i32, i32) {
    %c0_i32 = arith.constant 0 : i32
    %c0_i32_0 = arith.constant 0 : i32
    %c0_i32_1 = arith.constant 0 : i32
    return %c0_i32, %c0_i32_0 : i32, i32
  }
  func.func @transform_2(%arg0: i32) -> (i32, i32) {
    %c0_i32 = arith.constant 0 : i32
    %c0_i32_0 = arith.constant 0 : i32
    %c0_i32_1 = arith.constant 0 : i32
    return %c0_i32, %c0_i32_0 : i32, i32
  }
  func.func @transform_3(%arg0: i32) -> (i32, i32) {
    %c0_i32 = arith.constant 0 : i32
    %c0_i32_0 = arith.constant 0 : i32
    return %arg0, %c0_i32 : i32, i32
  }
}

module attributes {stable_mosaic.version = 11 : i64} {
  func.func @_matmul_bias_act_kernel(%arg0: i32, %arg1: memref<56x512xbf16, #tpu.memory_space<vmem>>, %arg2: memref<512x256xbf16, #tpu.memory_space<vmem>>, %arg3: memref<1x256xf32, #tpu.memory_space<vmem>>, %arg4: memref<56x256xf32, #tpu.memory_space<vmem>>) attributes {dimension_semantics = [#tpu.dimension_semantics<parallel>], iteration_bounds = array<i64: 1>, scalar_prefetch = 0 : i64, scratch_operands = 0 : i64, tpu.core_type = #tpu.core_type<tc>, window_params = [{transform_indices = @transform_0, window_bounds = array<i64: 56, 512>}, {pipeline_mode = #tpu.pipeline_mode<synchronous>, transform_indices = @transform_1, window_bounds = array<i64: 512, 256>}, {pipeline_mode = #tpu.pipeline_mode<synchronous>, transform_indices = @transform_2, window_bounds = array<i64: 1, 256>}, {transform_indices = @transform_3, window_bounds = array<i64: 56, 256>}]} {
    %c0 = arith.constant 0 : index
    %c0_0 = arith.constant 0 : index
    %0 = vector.load %arg1[%c0, %c0_0] : memref<56x512xbf16, #tpu.memory_space<vmem>>, vector<56x512xbf16>
    %c0_1 = arith.constant 0 : index
    %c0_2 = arith.constant 0 : index
    %1 = vector.load %arg2[%c0_1, %c0_2] : memref<512x256xbf16, #tpu.memory_space<vmem>>, vector<512x256xbf16>
    %cst = arith.constant dense<0.000000e+00> : vector<56x256xf32>
    %2 = tpu.matmul %0, %1, %cst {dimension_numbers = #tpu.dot_dimension_numbers<[1], [0], [0], [1], [0, 0, 1, 1], [], []>} : vector<56x512xbf16>, vector<512x256xbf16>, vector<56x256xf32> -> vector<56x256xf32>
    %c0_3 = arith.constant 0 : index
    %c0_4 = arith.constant 0 : index
    %3 = vector.load %arg3[%c0_3, %c0_4] : memref<1x256xf32, #tpu.memory_space<vmem>>, vector<1x256xf32>
    %4 = vector.broadcast %3 : vector<1x256xf32> to vector<56x256xf32>
    %5 = arith.addf %2, %4 : vector<56x256xf32>
    %cst_5 = arith.constant 0.000000e+00 : f32
    %6 = vector.broadcast %cst_5 : f32 to vector<56x256xf32>
    %7 = arith.maximumf %5, %6 : vector<56x256xf32>
    %c0_6 = arith.constant 0 : index
    %c0_7 = arith.constant 0 : index
    %8 = vector.load %arg4[%c0_6, %c0_7] : memref<56x256xf32, #tpu.memory_space<vmem>>, vector<56x256xf32>
    tpu.vector_store %arg4[%c0_6, %c0_7], %7 {strides = array<i32>} : memref<56x256xf32, #tpu.memory_space<vmem>>, vector<56x256xf32>,
    return
  }
  func.func @transform_0(%arg0: i32) -> (i32, i32) {
    %c0_i32 = arith.constant 0 : i32
    %c0_i32_0 = arith.constant 0 : i32
    return %arg0, %c0_i32 : i32, i32
  }
  func.func @transform_1(%arg0: i32) -> (i32, i32) {
    %c0_i32 = arith.constant 0 : i32
    %c0_i32_0 = arith.constant 0 : i32
    %c0_i32_1 = arith.constant 0 : i32
    return %c0_i32, %c0_i32_0 : i32, i32
  }
  func.func @transform_2(%arg0: i32) -> (i32, i32) {
    %c0_i32 = arith.constant 0 : i32
    %c0_i32_0 = arith.constant 0 : i32
    %c0_i32_1 = arith.constant 0 : i32
    return %c0_i32, %c0_i32_0 : i32, i32
  }
  func.func @transform_3(%arg0: i32) -> (i32, i32) {
    %c0_i32 = arith.constant 0 : i32
    %c0_i32_0 = arith.constant 0 : i32
    return %arg0, %c0_i32 : i32, i32
  }
}

module attributes {stable_mosaic.version = 11 : i64} {
  func.func @_matmul_bias_act_kernel(%arg0: i32, %arg1: memref<168x256xbf16, #tpu.memory_space<vmem>>, %arg2: memref<256x128xbf16, #tpu.memory_space<vmem>>, %arg3: memref<1x128xf32, #tpu.memory_space<vmem>>, %arg4: memref<168x128xf32, #tpu.memory_space<vmem>>) attributes {dimension_semantics = [#tpu.dimension_semantics<parallel>], iteration_bounds = array<i64: 1>, scalar_prefetch = 0 : i64, scratch_operands = 0 : i64, tpu.core_type = #tpu.core_type<tc>, window_params = [{transform_indices = @transform_0, window_bounds = array<i64: 168, 256>}, {pipeline_mode = #tpu.pipeline_mode<synchronous>, transform_indices = @transform_1, window_bounds = array<i64: 256, 128>}, {pipeline_mode = #tpu.pipeline_mode<synchronous>, transform_indices = @transform_2, window_bounds = array<i64: 1, 128>}, {transform_indices = @transform_3, window_bounds = array<i64: 168, 128>}]} {
    %c0 = arith.constant 0 : index
    %c0_0 = arith.constant 0 : index
    %0 = vector.load %arg1[%c0, %c0_0] : memref<168x256xbf16, #tpu.memory_space<vmem>>, vector<168x256xbf16>
    %c0_1 = arith.constant 0 : index
    %c0_2 = arith.constant 0 : index
    %1 = vector.load %arg2[%c0_1, %c0_2] : memref<256x128xbf16, #tpu.memory_space<vmem>>, vector<256x128xbf16>
    %cst = arith.constant dense<0.000000e+00> : vector<168x128xf32>
    %2 = tpu.matmul %0, %1, %cst {dimension_numbers = #tpu.dot_dimension_numbers<[1], [0], [0], [1], [0, 0, 1, 1], [], []>} : vector<168x256xbf16>, vector<256x128xbf16>, vector<168x128xf32> -> vector<168x128xf32>
    %c0_3 = arith.constant 0 : index
    %c0_4 = arith.constant 0 : index
    %3 = vector.load %arg3[%c0_3, %c0_4] : memref<1x128xf32, #tpu.memory_space<vmem>>, vector<1x128xf32>
    %4 = vector.broadcast %3 : vector<1x128xf32> to vector<168x128xf32>
    %5 = arith.addf %2, %4 : vector<168x128xf32>
    %6 = arith.negf %5 : vector<168x128xf32>
    %7 = math.exp %6 : vector<168x128xf32>
    %cst_5 = arith.constant 1.000000e+00 : f32
    %8 = vector.broadcast %cst_5 : f32 to vector<168x128xf32>
    %9 = arith.addf %8, %7 : vector<168x128xf32>
    %10 = arith.divf %8, %9 : vector<168x128xf32>
    %c0_6 = arith.constant 0 : index
    %c0_7 = arith.constant 0 : index
    %11 = vector.load %arg4[%c0_6, %c0_7] : memref<168x128xf32, #tpu.memory_space<vmem>>, vector<168x128xf32>
    tpu.vector_store %arg4[%c0_6, %c0_7], %10 {strides = array<i32>} : memref<168x128xf32, #tpu.memory_space<vmem>>, vector<168x128xf32>,
    return
  }
  func.func @transform_0(%arg0: i32) -> (i32, i32) {
    %c0_i32 = arith.constant 0 : i32
    %c0_i32_0 = arith.constant 0 : i32
    return %arg0, %c0_i32 : i32, i32
  }
  func.func @transform_1(%arg0: i32) -> (i32, i32) {
    %c0_i32 = arith.constant 0 : i32
    %c0_i32_0 = arith.constant 0 : i32
    %c0_i32_1 = arith.constant 0 : i32
    return %c0_i32, %c0_i32_0 : i32, i32
  }
  func.func @transform_2(%arg0: i32) -> (i32, i32) {
    %c0_i32 = arith.constant 0 : i32
    %c0_i32_0 = arith.constant 0 : i32
    %c0_i32_1 = arith.constant 0 : i32
    return %c0_i32, %c0_i32_0 : i32, i32
  }
  func.func @transform_3(%arg0: i32) -> (i32, i32) {
    %c0_i32 = arith.constant 0 : i32
    %c0_i32_0 = arith.constant 0 : i32
    return %arg0, %c0_i32 : i32, i32
  }
}

</mosaic_0001>

<llo_original>
// kernel: vitonhd_forward.4
$region0: #{vitonhd_forward.4}
  #allocation0 [shape = 'u32[]', space=smem, size = 0x4, offset = 0x4, fixed_abs, tag = 'smem constant byte address 0x4 - core index']
  #allocation1 [shape = 'u32[144,128]{1,0:T(1,128)}', space=vmem, size = 0x12000, scoped, tag = 'internal scratch']
  %s0 = inlined_call_operand.vmem [shape: bf16[128,128], index: 0, kind: input, shape index: {}]
  %s1 = inlined_call_operand.vmem [shape: bf16[128,128], index: 1, kind: input, shape index: {}]
  %s2 = inlined_call_operand.vmem [shape: f32[1,128], index: 2, kind: input, shape index: {}]
  %s3 = inlined_call_operand.vmem [shape: f32[128,128], index: 3, kind: output, shape index: {}]
  %s4 = sld [smem:[#allocation0]]
  $region22: #{vitonhd_forward.4} parent=0
    _
  %s6 = ssub.s32 1, %s4
  %s7 = scalar_select 0, %s6, %s4
  // Predicated region
  $region2: #{vitonhd_forward.4} parent=0 // pred_check
    _
  $region3: #{vitonhd_forward.4} parent=0 // pred_check_branch
    %9 = sbr.rel (0) target = $region5
  $region4: #{vitonhd_forward.4} parent=0 // pred_region
    _
  $region5: #{vitonhd_forward.4} parent=0 // pred_fallthru
    _
  // Predicated region
  $region6: #{vitonhd_forward.4} parent=0 // pred_check
    _
  $region7: #{vitonhd_forward.4} parent=0 // pred_check_branch
    %11 = sbr.rel (0) target = $region9
  $region8: #{vitonhd_forward.4} parent=0 // pred_region
    _
  $region9: #{vitonhd_forward.4} parent=0 // pred_fallthru
    _
  // Predicated region
  $region10: #{vitonhd_forward.4} parent=0 // pred_check
    _
  $region11: #{vitonhd_forward.4} parent=0 // pred_check_branch
    %13 = sbr.rel (0) target = $region13
  $region12: #{vitonhd_forward.4} parent=0 // pred_region
    _
  $region13: #{vitonhd_forward.4} parent=0 // pred_fallthru
    _
  %v15 = vld [vmem:[%s0] sm:$0xf]
  %v16 = vld [vmem:[%s0 + $0x4] sm:$0xf]
  %v17 = vld [vmem:[%s0 + $0x8] sm:$0xf]
  %v18 = vld [vmem:[%s0 + $0xc] sm:$0xf]
  %v19 = vld [vmem:[%s0 + $0x10] sm:$0xf]
  %v20 = vld [vmem:[%s0 + $0x14] sm:$0xf]
  %v21 = vld [vmem:[%s0 + $0x18] sm:$0xf]
  %v22 = vld [vmem:[%s0 + $0x1c] sm:$0xf]
  %v23 = vld [vmem:[%s0 + $0x20] sm:$0xf]
  %v24 = vld [vmem:[%s0 + $0x24] sm:$0xf]
  %v25 = vld [vmem:[%s0 + $0x28] sm:$0xf]
  %v26 = vld [vmem:[%s0 + $0x2c] sm:$0xf]
  %v27 = vld [vmem:[%s0 + $0x30] sm:$0xf]
  %v28 = vld [vmem:[%s0 + $0x34] sm:$0xf]
  %v29 = vld [vmem:[%s0 + $0x38] sm:$0xf]
  %v30 = vld [vmem:[%s0 + $0x3c] sm:$0xf]
  %v31 = vld [vmem:[%s1] sm:$0xf]
  %v32 = vld [vmem:[%s1 + $0x4] sm:$0xf]
  %v33 = vld [vmem:[%s1 + $0x8] sm:$0xf]
  %v34 = vld [vmem:[%s1 + $0xc] sm:$0xf]
  %v35 = vld [vmem:[%s1 + $0x10] sm:$0xf]
  %v36 = vld [vmem:[%s1 + $0x14] sm:$0xf]
  %v37 = vld [vmem:[%s1 + $0x18] sm:$0xf]
  %v38 = vld [vmem:[%s1 + $0x1c] sm:$0xf]
  %v39 = vld [vmem:[%s1 + $0x20] sm:$0xf]
  %v40 = vld [vmem:[%s1 + $0x24] sm:$0xf]
  %v41 = vld [vmem:[%s1 + $0x28] sm:$0xf]
  %v42 = vld [vmem:[%s1 + $0x2c] sm:$0xf]
  %v43 = vld [vmem:[%s1 + $0x30] sm:$0xf]
  %v44 = vld [vmem:[%s1 + $0x34] sm:$0xf]
  %v45 = vld [vmem:[%s1 + $0x38] sm:$0xf]
  %v46 = vld [vmem:[%s1 + $0x3c] sm:$0xf]
  %v47 = vld [vmem:[%s2] sm:$0x1]
  %v49 = vlaneseq
  %v50 = vshrl.u32 %v49, 7
  %v51 = vsub.s32 0, %v50
  %v52 = vrot.slane %v47, %v51
  %v70 = vunpack.c.l.b16 %v15
  %v71 = vunpack.c.l.b16 %v16
  %v72 = vunpack.c.l.b16 %v17
  %v73 = vunpack.c.l.b16 %v18
  %v74 = vunpack.c.l.b16 %v19
  %v75 = vunpack.c.l.b16 %v20
  %v76 = vunpack.c.l.b16 %v21
  %v77 = vunpack.c.l.b16 %v22
  %v78 = vunpack.c.l.b16 %v23
  %v79 = vunpack.c.l.b16 %v24
  %v80 = vunpack.c.l.b16 %v25
  %v81 = vunpack.c.l.b16 %v26
  %v82 = vunpack.c.l.b16 %v27
  %v83 = vunpack.c.l.b16 %v28
  %v84 = vunpack.c.l.b16 %v29
  %v85 = vunpack.c.l.b16 %v30
  %v86 = vpack.c.b16 %v71, %v70
  %v87 = vpack.c.b16 %v73, %v72
  %v88 = vpack.c.b16 %v75, %v74
  %v89 = vpack.c.b16 %v77, %v76
  %v90 = vpack.c.b16 %v79, %v78
  %v91 = vpack.c.b16 %v81, %v80
  %v92 = vpack.c.b16 %v83, %v82
  %v93 = vpack.c.b16 %v85, %v84
  %v118 = vunpack.c.l.b16 %v31
  %v119 = vunpack.c.l.b16 %v32
  %v120 = vunpack.c.l.b16 %v33
  %v121 = vunpack.c.l.b16 %v34
  %v122 = vunpack.c.l.b16 %v35
  %v123 = vunpack.c.l.b16 %v36
  %v124 = vunpack.c.l.b16 %v37
  %v125 = vunpack.c.l.b16 %v38
  %v126 = vunpack.c.l.b16 %v39
  %v127 = vunpack.c.l.b16 %v40
  %v128 = vunpack.c.l.b16 %v41
  %v129 = vunpack.c.l.b16 %v42
  %v130 = vunpack.c.l.b16 %v43
  %v131 = vunpack.c.l.b16 %v44
  %v132 = vunpack.c.l.b16 %v45
  %v133 = vunpack.c.l.b16 %v46
  %v134 = vpack.c.b16 %v119, %v118
  %v135 = vpack.c.b16 %v121, %v120
  %v136 = vpack.c.b16 %v123, %v122
  %v137 = vpack.c.b16 %v125, %v124
  %v138 = vpack.c.b16 %v127, %v126
  %v139 = vpack.c.b16 %v129, %v128
  %v140 = vpack.c.b16 %v131, %v130
  %v141 = vpack.c.b16 %v133, %v132
  %150 = vmatprep.subr.bf16.mxu0 0
  %151 = vmatpush1.bf16.msra.mxu0 %v141
  %152 = vmatprep.subr.bf16.mxu0 0
  %153 = vmatpush1.bf16.msra.mxu0 %v140
  %154 = vmatprep.subr.bf16.mxu0 0
  %155 = vmatpush1.bf16.msra.mxu0 %v139
  %156 = vmatprep.subr.bf16.mxu0 0
  %157 = vmatpush1.bf16.msra.mxu0 %v138
  %158 = vmatprep.subr.bf16.mxu0 0
  %159 = vmatpush1.bf16.msra.mxu0 %v137
  %160 = vmatprep.subr.bf16.mxu0 0
  %161 = vmatpush1.bf16.msra.mxu0 %v136
  %162 = vmatprep.subr.bf16.mxu0 0
  %163 = vmatpush1.bf16.msra.mxu0 %v135
  %164 = vmatprep.subr.bf16.mxu0 0
  %165 = vmatpush1.bf16.msra.mxu0 %v134
  %166 = vmatprep.subr.bf16.mxu0 0
  %167 = vmatpush2.bf16.msra.mxu0 0
  %168 = vmatprep.subr.bf16.mxu0 0
  %169 = vmatpush2.bf16.msra.mxu0 0
  %170 = vmatprep.subr.bf16.mxu0 0
  %171 = vmatpush2.bf16.msra.mxu0 0
  %172 = vmatprep.subr.bf16.mxu0 0
  %173 = vmatpush2.bf16.msra.mxu0 0
  %174 = vmatprep.subr.bf16.mxu0 0
  %175 = vmatpush2.bf16.msra.mxu0 0
  %176 = vmatprep.subr.bf16.mxu0 0
  %177 = vmatpush2.bf16.msra.mxu0 0
  %178 = vmatprep.subr.bf16.mxu0 0
  %179 = vmatpush2.bf16.msra.mxu0 0
  %180 = vmatprep.subr.bf16.mxu0 0
  %181 = vmatpush2.bf16.msra.mxu0 0
  %182 = vmatprep.mubr.bf16.mxu0 0
  %183 = vmatmul.mubr.bf16.gmra.mxu0 %v86
  %v184 = vpop.f32.mrf.mxu0
  %v185 = vadd.f32 %v52, %v184
  %v186 = vpop.f32.mrf.mxu0
  %v187 = vpop.f32.mrf.mxu0
  %v188 = vadd.f32 %v52, %v187
  %v189 = vpop.f32.mrf.mxu0
  %190 = vmatprep.mubr.bf16.mxu0 0
  %191 = vmatmul.mubr.bf16.gmra.mxu0 %v87
  %v192 = vpop.f32.mrf.mxu0
  %v193 = vadd.f32 %v52, %v192
  %v194 = vpop.f32.mrf.mxu0
  %v195 = vpop.f32.mrf.mxu0
  %v196 = vadd.f32 %v52, %v195
  %v197 = vpop.f32.mrf.mxu0
  %198 = vmatprep.mubr.bf16.mxu0 0
  %199 = vmatmul.mubr.bf16.gmra.mxu0 %v88
  %v200 = vpop.f32.mrf.mxu0
  %v201 = vadd.f32 %v52, %v200
  %v202 = vpop.f32.mrf.mxu0
  %v203 = vpop.f32.mrf.mxu0
  %v204 = vadd.f32 %v52, %v203
  %v205 = vpop.f32.mrf.mxu0
  %206 = vmatprep.mubr.bf16.mxu0 0
  %207 = vmatmul.mubr.bf16.gmra.mxu0 %v89
  %v208 = vpop.f32.mrf.mxu0
  %v209 = vadd.f32 %v52, %v208
  %v210 = vpop.f32.mrf.mxu0
  %v211 = vpop.f32.mrf.mxu0
  %v212 = vadd.f32 %v52, %v211
  %v213 = vpop.f32.mrf.mxu0
  %214 = vmatprep.mubr.bf16.mxu0 0
  %215 = vmatmul.mubr.bf16.gmra.mxu0 %v90
  %v216 = vpop.f32.mrf.mxu0
  %v217 = vadd.f32 %v52, %v216
  %v218 = vpop.f32.mrf.mxu0
  %v219 = vpop.f32.mrf.mxu0
  %v220 = vadd.f32 %v52, %v219
  %v221 = vpop.f32.mrf.mxu0
  %222 = vmatprep.mubr.bf16.mxu0 0
  %223 = vmatmul.mubr.bf16.gmra.mxu0 %v91
  %v224 = vpop.f32.mrf.mxu0
  %v225 = vadd.f32 %v52, %v224
  %v226 = vpop.f32.mrf.mxu0
  %v227 = vpop.f32.mrf.mxu0
  %v228 = vadd.f32 %v52, %v227
  %v229 = vpop.f32.mrf.mxu0
  %230 = vmatprep.mubr.bf16.mxu0 0
  %231 = vmatmul.mubr.bf16.gmra.mxu0 %v92
  %v232 = vpop.f32.mrf.mxu0
  %v233 = vadd.f32 %v52, %v232
  %v234 = vpop.f32.mrf.mxu0
  %v235 = vpop.f32.mrf.mxu0
  %v236 = vadd.f32 %v52, %v235
  %v237 = vpop.f32.mrf.mxu0
  %238 = vmatprep.mubr.bf16.mxu0 0
  %239 = vmatmul.mubr.bf16.gmra.mxu0 %v93
  %v240 = vpop.f32.mrf.mxu0
  %v241 = vadd.f32 %v52, %v240
  %v242 = vpop.f32.mrf.mxu0
  %v243 = vpop.f32.mrf.mxu0
  %v244 = vadd.f32 %v52, %v243
  %v245 = vpop.f32.mrf.mxu0
  %246 = vdwg.mxu0
  %v247 = vmax.f32 %v185, 0.0
  %v248 = vmax.f32 %v188, 0.0
  %v249 = vmax.f32 %v193, 0.0
  %v250 = vmax.f32 %v196, 0.0
  %v251 = vmax.f32 %v201, 0.0
  %v252 = vmax.f32 %v204, 0.0
  %v253 = vmax.f32 %v209, 0.0
  %v254 = vmax.f32 %v212, 0.0
  %v255 = vmax.f32 %v217, 0.0
  %v256 = vmax.f32 %v220, 0.0
  %v257 = vmax.f32 %v225, 0.0
  %v258 = vmax.f32 %v228, 0.0
  %v259 = vmax.f32 %v233, 0.0
  %v260 = vmax.f32 %v236, 0.0
  %v261 = vmax.f32 %v241, 0.0
  %v262 = vmax.f32 %v244, 0.0
  %263 = vst [vmem:[%s3] sm:$0xff] %v247
  %264 = vst [vmem:[%s3 + $0x8] sm:$0xff] %v248
  %265 = vst [vmem:[%s3 + $0x10] sm:$0xff] %v249
  %266 = vst [vmem:[%s3 + $0x18] sm:$0xff] %v250
  %267 = vst [vmem:[%s3 + $0x20] sm:$0xff] %v251
  %268 = vst [vmem:[%s3 + $0x28] sm:$0xff] %v252
  %269 = vst [vmem:[%s3 + $0x30] sm:$0xff] %v253
  %270 = vst [vmem:[%s3 + $0x38] sm:$0xff] %v254
  %271 = vst [vmem:[%s3 + $0x40] sm:$0xff] %v255
  %272 = vst [vmem:[%s3 + $0x48] sm:$0xff] %v256
  %273 = vst [vmem:[%s3 + $0x50] sm:$0xff] %v257
  %274 = vst [vmem:[%s3 + $0x58] sm:$0xff] %v258
  %275 = vst [vmem:[%s3 + $0x60] sm:$0xff] %v259
  %276 = vst [vmem:[%s3 + $0x68] sm:$0xff] %v260
  %277 = vst [vmem:[%s3 + $0x70] sm:$0xff] %v261
  %278 = vst [vmem:[%s3 + $0x78] sm:$0xff] %v262
  // Predicated region
  $region14: #{vitonhd_forward.4} parent=0 // pred_check
    _
  $region15: #{vitonhd_forward.4} parent=0 // pred_check_branch
    %280 = sbr.rel (0) target = $region17
  $region16: #{vitonhd_forward.4} parent=0 // pred_region
    _
  $region17: #{vitonhd_forward.4} parent=0 // pred_fallthru
    _
  // Predicated region
  $region18: #{vitonhd_forward.4} parent=0 // pred_check
    _
  $region19: #{vitonhd_forward.4} parent=0 // pred_check_branch
    %282 = sbr.rel (0) target = $region21
  $region20: #{vitonhd_forward.4} parent=0 // pred_region
    _
  $region21: #{vitonhd_forward.4} parent=0 // pred_fallthru
    _

// kernel: vitonhd_forward.5
$region0: #{vitonhd_forward.5}
  #allocation0 [shape = 'u32[]', space=smem, size = 0x4, offset = 0x4, fixed_abs, tag = 'smem constant byte address 0x4 - core index']
  #allocation1 [shape = 'u32[144,128]{1,0:T(1,128)}', space=vmem, size = 0x12000, scoped, tag = 'internal scratch']
  %s0 = inlined_call_operand.vmem [shape: bf16[32,1024], index: 0, kind: input, shape index: {}]
  %s1 = inlined_call_operand.vmem [shape: bf16[1024,128], index: 1, kind: input, shape index: {}]
  %s2 = inlined_call_operand.vmem [shape: f32[1,128], index: 2, kind: input, shape index: {}]
  %s3 = inlined_call_operand.vmem [shape: f32[32,128], index: 3, kind: output, shape index: {}]
  %s4 = sld [smem:[#allocation0]]
  $region22: #{vitonhd_forward.5} parent=0
    _
  %s6 = ssub.s32 1, %s4
  %s7 = scalar_select 0, %s6, %s4
  // Predicated region
  $region2: #{vitonhd_forward.5} parent=0 // pred_check
    _
  $region3: #{vitonhd_forward.5} parent=0 // pred_check_branch
    %9 = sbr.rel (0) target = $region5
  $region4: #{vitonhd_forward.5} parent=0 // pred_region
    _
  $region5: #{vitonhd_forward.5} parent=0 // pred_fallthru
    _
  // Predicated region
  $region6: #{vitonhd_forward.5} parent=0 // pred_check
    _
  $region7: #{vitonhd_forward.5} parent=0 // pred_check_branch
    %11 = sbr.rel (0) target = $region9
  $region8: #{vitonhd_forward.5} parent=0 // pred_region
    _
  $region9: #{vitonhd_forward.5} parent=0 // pred_fallthru
    _
  // Predicated region
  $region10: #{vitonhd_forward.5} parent=0 // pred_check
    _
  $region11: #{vitonhd_forward.5} parent=0 // pred_check_branch
    %13 = sbr.rel (0) target = $region13
  $region12: #{vitonhd_forward.5} parent=0 // pred_region
    _
  $region13: #{vitonhd_forward.5} parent=0 // pred_fallthru
    _
  %v15 = vld [vmem:[%s0] sm:$0xff]
  %v16 = vld [vmem:[%s0 + $0x8] sm:$0xff]
  %v17 = vld [vmem:[%s0 + $0x10] sm:$0xff]
  %v18 = vld [vmem:[%s0 + $0x18] sm:$0xff]
  %v19 = vld [vmem:[%s0 + $0x20] sm:$0xff]
  %v20 = vld [vmem:[%s0 + $0x28] sm:$0xff]
  %v21 = vld [vmem:[%s0 + $0x30] sm:$0xff]
  %v22 = vld [vmem:[%s0 + $0x38] sm:$0xff]
  %v23 = vld [vmem:[%s0 + $0x40] sm:$0xff]
  %v24 = vld [vmem:[%s0 + $0x48] sm:$0xff]
  %v25 = vld [vmem:[%s0 + $0x50] sm:$0xff]
  %v26 = vld [vmem:[%s0 + $0x58] sm:$0xff]
  %v27 = vld [vmem:[%s0 + $0x60] sm:$0xff]
  %v28 = vld [vmem:[%s0 + $0x68] sm:$0xff]
  %v29 = vld [vmem:[%s0 + $0x70] sm:$0xff]
  %v30 = vld [vmem:[%s0 + $0x78] sm:$0xff]
  %v31 = vld [vmem:[%s1] sm:$0xf]
  %v32 = vld [vmem:[%s1 + $0x4] sm:$0xf]
  %v33 = vld [vmem:[%s1 + $0x8] sm:$0xf]
  %v34 = vld [vmem:[%s1 + $0xc] sm:$0xf]
  %v35 = vld [vmem:[%s1 + $0x10] sm:$0xf]
  %v36 = vld [vmem:[%s1 + $0x14] sm:$0xf]
  %v37 = vld [vmem:[%s1 + $0x18] sm:$0xf]
  %v38 = vld [vmem:[%s1 + $0x1c] sm:$0xf]
  %v39 = vld [vmem:[%s1 + $0x20] sm:$0xf]
  %v40 = vld [vmem:[%s1 + $0x24] sm:$0xf]
  %v41 = vld [vmem:[%s1 + $0x28] sm:$0xf]
  %v42 = vld [vmem:[%s1 + $0x2c] sm:$0xf]
  %v43 = vld [vmem:[%s1 + $0x30] sm:$0xf]
  %v44 = vld [vmem:[%s1 + $0x34] sm:$0xf]
  %v45 = vld [vmem:[%s1 + $0x38] sm:$0xf]
  %v46 = vld [vmem:[%s1 + $0x3c] sm:$0xf]
  %v47 = vld [vmem:[%s1 + $0x40] sm:$0xf]
  %v48 = vld [vmem:[%s1 + $0x44] sm:$0xf]
  %v49 = vld [vmem:[%s1 + $0x48] sm:$0xf]
  %v50 = vld [vmem:[%s1 + $0x4c] sm:$0xf]
  %v51 = vld [vmem:[%s1 + $0x50] sm:$0xf]
  %v52 = vld [vmem:[%s1 + $0x54] sm:$0xf]
  %v53 = vld [vmem:[%s1 + $0x58] sm:$0xf]
  %v54 = vld [vmem:[%s1 + $0x5c] sm:$0xf]
  %v55 = vld [vmem:[%s1 + $0x60] sm:$0xf]
  %v56 = vld [vmem:[%s1 + $0x64] sm:$0xf]
  %v57 = vld [vmem:[%s1 + $0x68] sm:$0xf]
  %v58 = vld [vmem:[%s1 + $0x6c] sm:$0xf]
  %v59 = vld [vmem:[%s1 + $0x70] sm:$0xf]
  %v60 = vld [vmem:[%s1 + $0x74] sm:$0xf]
  %v61 = vld [vmem:[%s1 + $0x78] sm:$0xf]
  %v62 = vld [vmem:[%s1 + $0x7c] sm:$0xf]
  %v63 = vld [vmem:[%s1 + $0x80] sm:$0xf]
  %v64 = vld [vmem:[%s1 + $0x84] sm:$0xf]
  %v65 = vld [vmem:[%s1 + $0x88] sm:$0xf]
  %v66 = vld [vmem:[%s1 + $0x8c] sm:$0xf]
  %v67 = vld [vmem:[%s1 + $0x90] sm:$0xf]
  %v68 = vld [vmem:[%s1 + $0x94] sm:$0xf]
  %v69 = vld [vmem:[%s1 + $0x98] sm:$0xf]
  %v70 = vld [vmem:[%s1 + $0x9c] sm:$0xf]
  %v71 = vld [vmem:[%s1 + $0xa0] sm:$0xf]
  %v72 = vld [vmem:[%s1 + $0xa4] sm:$0xf]
  %v73 = vld [vmem:[%s1 + $0xa8] sm:$0xf]
  %v74 = vld [vmem:[%s1 + $0xac] sm:$0xf]
  %v75 = vld [vmem:[%s1 + $0xb0] sm:$0xf]
  %v76 = vld [vmem:[%s1 + $0xb4] sm:$0xf]
  %v77 = vld [vmem:[%s1 + $0xb8] sm:$0xf]
  %v78 = vld [vmem:[%s1 + $0xbc] sm:$0xf]
  %v79 = vld [vmem:[%s1 + $0xc0] sm:$0xf]
  %v80 = vld [vmem:[%s1 + $0xc4] sm:$0xf]
  %v81 = vld [vmem:[%s1 + $0xc8] sm:$0xf]
  %v82 = vld [vmem:[%s1 + $0xcc] sm:$0xf]
  %v83 = vld [vmem:[%s1 + $0xd0] sm:$0xf]
  %v84 = vld [vmem:[%s1 + $0xd4] sm:$0xf]
  %v85 = vld [vmem:[%s1 + $0xd8] sm:$0xf]
  %v86 = vld [vmem:[%s1 + $0xdc] sm:$0xf]
  %v87 = vld [vmem:[%s1 + $0xe0] sm:$0xf]
  %v88 = vld [vmem:[%s1 + $0xe4] sm:$0xf]
  %v89 = vld [vmem:[%s1 + $0xe8] sm:$0xf]
  %v90 = vld [vmem:[%s1 + $0xec] sm:$0xf]
  %v91 = vld [vmem:[%s1 + $0xf0] sm:$0xf]
  %v92 = vld [vmem:[%s1 + $0xf4] sm:$0xf]
  %v93 = vld [vmem:[%s1 + $0xf8] sm:$0xf]
  %v94 = vld [vmem:[%s1 + $0xfc] sm:$0xf]
  %v95 = vld [vmem:[%s1 + $0x100] sm:$0xf]
  %v96 = vld [vmem:[%s1 + $0x104] sm:$0xf]
  %v97 = vld [vmem:[%s1 + $0x108] sm:$0xf]
  %v98 = vld [vmem:[%s1 + $0x10c] sm:$0xf]
  %v99 = vld [vmem:[%s1 + $0x110] sm:$0xf]
  %v100 = vld [vmem:[%s1 + $0x114] sm:$0xf]
  %v101 = vld [vmem:[%s1 + $0x118] sm:$0xf]
  %v102 = vld [vmem:[%s1 + $0x11c] sm:$0xf]
  %v103 = vld [vmem:[%s1 + $0x120] sm:$0xf]
  %v104 = vld [vmem:[%s1 + $0x124] sm:$0xf]
  %v105 = vld [vmem:[%s1 + $0x128] sm:$0xf]
  %v106 = vld [vmem:[%s1 + $0x12c] sm:$0xf]
  %v107 = vld [vmem:[%s1 + $0x130] sm:$0xf]
  %v108 = vld [vmem:[%s1 + $0x134] sm:$0xf]
  %v109 = vld [vmem:[%s1 + $0x138] sm:$0xf]
  %v110 = vld [vmem:[%s1 + $0x13c] sm:$0xf]
  %v111 = vld [vmem:[%s1 + $0x140] sm:$0xf]
  %v112 = vld [vmem:[%s1 + $0x144] sm:$0xf]
  %v113 = vld [vmem:[%s1 + $0x148] sm:$0xf]
  %v114 = vld [vmem:[%s1 + $0x14c] sm:$0xf]
  %v115 = vld [vmem:[%s1 + $0x150] sm:$0xf]
  %v116 = vld [vmem:[%s1 + $0x154] sm:$0xf]
  %v117 = vld [vmem:[%s1 + $0x158] sm:$0xf]
  %v118 = vld [vmem:[%s1 + $0x15c] sm:$0xf]
  %v119 = vld [vmem:[%s1 + $0x160] sm:$0xf]
  %v120 = vld [vmem:[%s1 + $0x164] sm:$0xf]
  %v121 = vld [vmem:[%s1 + $0x168] sm:$0xf]
  %v122 = vld [vmem:[%s1 + $0x16c] sm:$0xf]
  %v123 = vld [vmem:[%s1 + $0x170] sm:$0xf]
  %v124 = vld [vmem:[%s1 + $0x174] sm:$0xf]
  %v125 = vld [vmem:[%s1 + $0x178] sm:$0xf]
  %v126 = vld [vmem:[%s1 + $0x17c] sm:$0xf]
  %v127 = vld [vmem:[%s1 + $0x180] sm:$0xf]
  %v128 = vld [vmem:[%s1 + $0x184] sm:$0xf]
  %v129 = vld [vmem:[%s1 + $0x188] sm:$0xf]
  %v130 = vld [vmem:[%s1 + $0x18c] sm:$0xf]
  %v131 = vld [vmem:[%s1 + $0x190] sm:$0xf]
  %v132 = vld [vmem:[%s1 + $0x194] sm:$0xf]
  %v133 = vld [vmem:[%s1 + $0x198] sm:$0xf]
  %v134 = vld [vmem:[%s1 + $0x19c] sm:$0xf]
  %v135 = vld [vmem:[%s1 + $0x1a0] sm:$0xf]
  %v136 = vld [vmem:[%s1 + $0x1a4] sm:$0xf]
  %v137 = vld [vmem:[%s1 + $0x1a8] sm:$0xf]
  %v138 = vld [vmem:[%s1 + $0x1ac] sm:$0xf]
  %v139 = vld [vmem:[%s1 + $0x1b0] sm:$0xf]
  %v140 = vld [vmem:[%s1 + $0x1b4] sm:$0xf]
  %v141 = vld [vmem:[%s1 + $0x1b8] sm:$0xf]
  %v142 = vld [vmem:[%s1 + $0x1bc] sm:$0xf]
  %v143 = vld [vmem:[%s1 + $0x1c0] sm:$0xf]
  %v144 = vld [vmem:[%s1 + $0x1c4] sm:$0xf]
  %v145 = vld [vmem:[%s1 + $0x1c8] sm:$0xf]
  %v146 = vld [vmem:[%s1 + $0x1cc] sm:$0xf]
  %v147 = vld [vmem:[%s1 + $0x1d0] sm:$0xf]
  %v148 = vld [vmem:[%s1 + $0x1d4] sm:$0xf]
  %v149 = vld [vmem:[%s1 + $0x1d8] sm:$0xf]
  %v150 = vld [vmem:[%s1 + $0x1dc] sm:$0xf]
  %v151 = vld [vmem:[%s1 + $0x1e0] sm:$0xf]
  %v152 = vld [vmem:[%s1 + $0x1e4] sm:$0xf]
  %v153 = vld [vmem:[%s1 + $0x1e8] sm:$0xf]
  %v154 = vld [vmem:[%s1 + $0x1ec] sm:$0xf]
  %v155 = vld [vmem:[%s1 + $0x1f0] sm:$0xf]
  %v156 = vld [vmem:[%s1 + $0x1f4] sm:$0xf]
  %v157 = vld [vmem:[%s1 + $0x1f8] sm:$0xf]
  %v158 = vld [vmem:[%s1 + $0x1fc] sm:$0xf]
  %v159 = vld [vmem:[%s2] sm:$0x1]
  %v161 = vlaneseq
  %v162 = vshrl.u32 %v161, 7
  %v163 = vsub.s32 0, %v162
  %v164 = vrot.slane %v159, %v163
  %v182 = vunpack.c.l.b16 %v15
  %v183 = vunpack.c.h.b16 %v15
  %v184 = vunpack.c.l.b16 %v16
  %v185 = vunpack.c.h.b16 %v16
  %v186 = vunpack.c.l.b16 %v17
  %v187 = vunpack.c.h.b16 %v17
  %v188 = vunpack.c.l.b16 %v18
  %v189 = vunpack.c.h.b16 %v18
  %v190 = vunpack.c.l.b16 %v19
  %v191 = vunpack.c.h.b16 %v19
  %v192 = vunpack.c.l.b16 %v20
  %v193 = vunpack.c.h.b16 %v20
  %v194 = vunpack.c.l.b16 %v21
  %v195 = vunpack.c.h.b16 %v21
  %v196 = vunpack.c.l.b16 %v22
  %v197 = vunpack.c.h.b16 %v22
  %v198 = vunpack.c.l.b16 %v23
  %v199 = vunpack.c.h.b16 %v23
  %v200 = vunpack.c.l.b16 %v24
  %v201 = vunpack.c.h.b16 %v24
  %v202 = vunpack.c.l.b16 %v25
  %v203 = vunpack.c.h.b16 %v25
  %v204 = vunpack.c.l.b16 %v26
  %v205 = vunpack.c.h.b16 %v26
  %v206 = vunpack.c.l.b16 %v27
  %v207 = vunpack.c.h.b16 %v27
  %v208 = vunpack.c.l.b16 %v28
  %v209 = vunpack.c.h.b16 %v28
  %v210 = vunpack.c.l.b16 %v29
  %v211 = vunpack.c.h.b16 %v29
  %v212 = vunpack.c.l.b16 %v30
  %v213 = vunpack.c.h.b16 %v30
  %v214 = vpack.c.b16 %v190, %v182
  %v215 = vpack.c.b16 %v191, %v183
  %v216 = vpack.c.b16 %v192, %v184
  %v217 = vpack.c.b16 %v193, %v185
  %v218 = vpack.c.b16 %v194, %v186
  %v219 = vpack.c.b16 %v195, %v187
  %v220 = vpack.c.b16 %v196, %v188
  %v221 = vpack.c.b16 %v197, %v189
  %v222 = vpack.c.b16 %v206, %v198
  %v223 = vpack.c.b16 %v207, %v199
  %v224 = vpack.c.b16 %v208, %v200
  %v225 = vpack.c.b16 %v209, %v201
  %v226 = vpack.c.b16 %v210, %v202
  %v227 = vpack.c.b16 %v211, %v203
  %v228 = vpack.c.b16 %v212, %v204
  %v229 = vpack.c.b16 %v213, %v205
  %v374 = vunpack.c.l.b16 %v31
  %v375 = vunpack.c.l.b16 %v32
  %v376 = vunpack.c.l.b16 %v33
  %v377 = vunpack.c.l.b16 %v34
  %v378 = vunpack.c.l.b16 %v35
  %v379 = vunpack.c.l.b16 %v36
  %v380 = vunpack.c.l.b16 %v37
  %v381 = vunpack.c.l.b16 %v38
  %v382 = vunpack.c.l.b16 %v39
  %v383 = vunpack.c.l.b16 %v40
  %v384 = vunpack.c.l.b16 %v41
  %v385 = vunpack.c.l.b16 %v42
  %v386 = vunpack.c.l.b16 %v43
  %v387 = vunpack.c.l.b16 %v44
  %v388 = vunpack.c.l.b16 %v45
  %v389 = vunpack.c.l.b16 %v46
  %v390 = vunpack.c.l.b16 %v47
  %v391 = vunpack.c.l.b16 %v48
  %v392 = vunpack.c.l.b16 %v49
  %v393 = vunpack.c.l.b16 %v50
  %v394 = vunpack.c.l.b16 %v51
  %v395 = vunpack.c.l.b16 %v52
  %v396 = vunpack.c.l.b16 %v53
  %v397 = vunpack.c.l.b16 %v54
  %v398 = vunpack.c.l.b16 %v55
  %v399 = vunpack.c.l.b16 %v56
  %v400 = vunpack.c.l.b16 %v57
  %v401 = vunpack.c.l.b16 %v58
  %v402 = vunpack.c.l.b16 %v59
  %v403 = vunpack.c.l.b16 %v60
  %v404 = vunpack.c.l.b16 %v61
  %v405 = vunpack.c.l.b16 %v62
  %v406 = vunpack.c.l.b16 %v63
  %v407 = vunpack.c.l.b16 %v64
  %v408 = vunpack.c.l.b16 %v65
  %v409 = vunpack.c.l.b16 %v66
  %v410 = vunpack.c.l.b16 %v67
  %v411 = vunpack.c.l.b16 %v68
  %v412 = vunpack.c.l.b16 %v69
  %v413 = vunpack.c.l.b16 %v70
  %v414 = vunpack.c.l.b16 %v71
  %v415 = vunpack.c.l.b16 %v72
  %v416 = vunpack.c.l.b16 %v73
  %v417 = vunpack.c.l.b16 %v74
  %v418 = vunpack.c.l.b16 %v75
  %v419 = vunpack.c.l.b16 %v76
  %v420 = vunpack.c.l.b16 %v77
  %v421 = vunpack.c.l.b16 %v78
  %v422 = vunpack.c.l.b16 %v79
  %v423 = vunpack.c.l.b16 %v80
  %v424 = vunpack.c.l.b16 %v81
  %v425 = vunpack.c.l.b16 %v82
  %v426 = vunpack.c.l.b16 %v83
  %v427 = vunpack.c.l.b16 %v84
  %v428 = vunpack.c.l.b16 %v85
  %v429 = vunpack.c.l.b16 %v86
  %v430 = vunpack.c.l.b16 %v87
  %v431 = vunpack.c.l.b16 %v88
  %v432 = vunpack.c.l.b16 %v89
  %v433 = vunpack.c.l.b16 %v90
  %v434 = vunpack.c.l.b16 %v91
  %v435 = vunpack.c.l.b16 %v92
  %v436 = vunpack.c.l.b16 %v93
  %v437 = vunpack.c.l.b16 %v94
  %v438 = vunpack.c.l.b16 %v95
  %v439 = vunpack.c.l.b16 %v96
  %v440 = vunpack.c.l.b16 %v97
  %v441 = vunpack.c.l.b16 %v98
  %v442 = vunpack.c.l.b16 %v99
  %v443 = vunpack.c.l.b16 %v100
  %v444 = vunpack.c.l.b16 %v101
  %v445 = vunpack.c.l.b16 %v102
  %v446 = vunpack.c.l.b16 %v103
  %v447 = vunpack.c.l.b16 %v104
  %v448 = vunpack.c.l.b16 %v105
  %v449 = vunpack.c.l.b16 %v106
  %v450 = vunpack.c.l.b16 %v107
  %v451 = vunpack.c.l.b16 %v108
  %v452 = vunpack.c.l.b16 %v109
  %v453 = vunpack.c.l.b16 %v110
  %v454 = vunpack.c.l.b16 %v111
  %v455 = vunpack.c.l.b16 %v112
  %v456 = vunpack.c.l.b16 %v113
  %v457 = vunpack.c.l.b16 %v114
  %v458 = vunpack.c.l.b16 %v115
  %v459 = vunpack.c.l.b16 %v116
  %v460 = vunpack.c.l.b16 %v117
  %v461 = vunpack.c.l.b16 %v118
  %v462 = vunpack.c.l.b16 %v119
  %v463 = vunpack.c.l.b16 %v120
  %v464 = vunpack.c.l.b16 %v121
  %v465 = vunpack.c.l.b16 %v122
  %v466 = vunpack.c.l.b16 %v123
  %v467 = vunpack.c.l.b16 %v124
  %v468 = vunpack.c.l.b16 %v125
  %v469 = vunpack.c.l.b16 %v126
  %v470 = vunpack.c.l.b16 %v127
  %v471 = vunpack.c.l.b16 %v128
  %v472 = vunpack.c.l.b16 %v129
  %v473 = vunpack.c.l.b16 %v130
  %v474 = vunpack.c.l.b16 %v131
  %v475 = vunpack.c.l.b16 %v132
  %v476 = vunpack.c.l.b16 %v133
  %v477 = vunpack.c.l.b16 %v134
  %v478 = vunpack.c.l.b16 %v135
  %v479 = vunpack.c.l.b16 %v136
  %v480 = vunpack.c.l.b16 %v137
  %v481 = vunpack.c.l.b16 %v138
  %v482 = vunpack.c.l.b16 %v139
  %v483 = vunpack.c.l.b16 %v140
  %v484 = vunpack.c.l.b16 %v141
  %v485 = vunpack.c.l.b16 %v142
  %v486 = vunpack.c.l.b16 %v143
  %v487 = vunpack.c.l.b16 %v144
  %v488 = vunpack.c.l.b16 %v145
  %v489 = vunpack.c.l.b16 %v146
  %v490 = vunpack.c.l.b16 %v147
  %v491 = vunpack.c.l.b16 %v148
  %v492 = vunpack.c.l.b16 %v149
  %v493 = vunpack.c.l.b16 %v150
  %v494 = vunpack.c.l.b16 %v151
  %v495 = vunpack.c.l.b16 %v152
  %v496 = vunpack.c.l.b16 %v153
  %v497 = vunpack.c.l.b16 %v154
  %v498 = vunpack.c.l.b16 %v155
  %v499 = vunpack.c.l.b16 %v156
  %v500 = vunpack.c.l.b16 %v157
  %v501 = vunpack.c.l.b16 %v158
  %v502 = vpack.c.b16 %v375, %v374
  %v503 = vpack.c.b16 %v377, %v376
  %v504 = vpack.c.b16 %v379, %v378
  %v505 = vpack.c.b16 %v381, %v380
  %v506 = vpack.c.b16 %v383, %v382
  %v507 = vpack.c.b16 %v385, %v384
  %v508 = vpack.c.b16 %v387, %v386
  %v509 = vpack.c.b16 %v389, %v388
  %v510 = vpack.c.b16 %v391, %v390
  %v511 = vpack.c.b16 %v393, %v392
  %v512 = vpack.c.b16 %v395, %v394
  %v513 = vpack.c.b16 %v397, %v396
  %v514 = vpack.c.b16 %v399, %v398
  %v515 = vpack.c.b16 %v401, %v400
  %v516 = vpack.c.b16 %v403, %v402
  %v517 = vpack.c.b16 %v405, %v404
  %v518 = vpack.c.b16 %v407, %v406
  %v519 = vpack.c.b16 %v409, %v408
  %v520 = vpack.c.b16 %v411, %v410
  %v521 = vpack.c.b16 %v413, %v412
  %v522 = vpack.c.b16 %v415, %v414
  %v523 = vpack.c.b16 %v417, %v416
  %v524 = vpack.c.b16 %v419, %v418
  %v525 = vpack.c.b16 %v421, %v420
  %v526 = vpack.c.b16 %v423, %v422
  %v527 = vpack.c.b16 %v425, %v424
  %v528 = vpack.c.b16 %v427, %v426
  %v529 = vpack.c.b16 %v429, %v428
  %v530 = vpack.c.b16 %v431, %v430
  %v531 = vpack.c.b16 %v433, %v432
  %v532 = vpack.c.b16 %v435, %v434
  %v533 = vpack.c.b16 %v437, %v436
  %v534 = vpack.c.b16 %v439, %v438
  %v535 = vpack.c.b16 %v441, %v440
  %v536 = vpack.c.b16 %v443, %v442
  %v537 = vpack.c.b16 %v445, %v444
  %v538 = vpack.c.b16 %v447, %v446
  %v539 = vpack.c.b16 %v449, %v448
  %v540 = vpack.c.b16 %v451, %v450
  %v541 = vpack.c.b16 %v453, %v452
  %v542 = vpack.c.b16 %v455, %v454
  %v543 = vpack.c.b16 %v457, %v456
  %v544 = vpack.c.b16 %v459, %v458
  %v545 = vpack.c.b16 %v461, %v460
  %v546 = vpack.c.b16 %v463, %v462
  %v547 = vpack.c.b16 %v465, %v464
  %v548 = vpack.c.b16 %v467, %v466
  %v549 = vpack.c.b16 %v469, %v468
  %v550 = vpack.c.b16 %v471, %v470
  %v551 = vpack.c.b16 %v473, %v472
  %v552 = vpack.c.b16 %v475, %v474
  %v553 = vpack.c.b16 %v477, %v476
  %v554 = vpack.c.b16 %v479, %v478
  %v555 = vpack.c.b16 %v481, %v480
  %v556 = vpack.c.b16 %v483, %v482
  %v557 = vpack.c.b16 %v485, %v484
  %v558 = vpack.c.b16 %v487, %v486
  %v559 = vpack.c.b16 %v489, %v488
  %v560 = vpack.c.b16 %v491, %v490
  %v561 = vpack.c.b16 %v493, %v492
  %v562 = vpack.c.b16 %v495, %v494
  %v563 = vpack.c.b16 %v497, %v496
  %v564 = vpack.c.b16 %v499, %v498
  %v565 = vpack.c.b16 %v501, %v500
  %630 = vmatprep.subr.bf16.mxu0 0
  %631 = vmatpush1.bf16.msra.mxu0 %v509
  %632 = vmatprep.subr.bf16.mxu0 0
  %633 = vmatpush1.bf16.msra.mxu0 %v508
  %634 = vmatprep.subr.bf16.mxu0 0
  %635 = vmatpush1.bf16.msra.mxu0 %v507
  %636 = vmatprep.subr.bf16.mxu0 0
  %637 = vmatpush1.bf16.msra.mxu0 %v506
  %638 = vmatprep.subr.bf16.mxu0 0
  %639 = vmatpush1.bf16.msra.mxu0 %v505
  %640 = vmatprep.subr.bf16.mxu0 0
  %641 = vmatpush1.bf16.msra.mxu0 %v504
  %642 = vmatprep.subr.bf16.mxu0 0
  %643 = vmatpush1.bf16.msra.mxu0 %v503
  %644 = vmatprep.subr.bf16.mxu0 0
  %645 = vmatpush1.bf16.msra.mxu0 %v502
  %646 = vmatprep.subr.bf16.mxu0 0
  %647 = vmatpush2.bf16.msra.mxu0 %v517
  %648 = vmatprep.subr.bf16.mxu0 0
  %649 = vmatpush2.bf16.msra.mxu0 %v516
  %650 = vmatprep.subr.bf16.mxu0 0
  %651 = vmatpush2.bf16.msra.mxu0 %v515
  %652 = vmatprep.subr.bf16.mxu0 0
  %653 = vmatpush2.bf16.msra.mxu0 %v514
  %654 = vmatprep.subr.bf16.mxu0 0
  %655 = vmatpush2.bf16.msra.mxu0 %v513
  %656 = vmatprep.subr.bf16.mxu0 0
  %657 = vmatpush2.bf16.msra.mxu0 %v512
  %658 = vmatprep.subr.bf16.mxu0 0
  %659 = vmatpush2.bf16.msra.mxu0 %v511
  %660 = vmatprep.subr.bf16.mxu0 0
  %661 = vmatpush2.bf16.msra.mxu0 %v510
  %662 = vmatprep.mubr.bf16.mxu0 %v215
  %663 = vmatmul.mubr.bf16.gmra.mxu0 %v214
  %v664 = vpop.f32.mrf.mxu0
  %v665 = vadd.f32 %v164, %v664
  %v666 = vpop.f32.mrf.mxu0
  %v667 = vpop.f32.mrf.mxu0
  %v668 = vadd.f32 %v164, %v667
  %v669 = vpop.f32.mrf.mxu0
  %670 = vmatprep.mubr.bf16.mxu0 %v223
  %671 = vmatmul.mubr.bf16.gmra.mxu0 %v222
  %v672 = vpop.f32.mrf.mxu0
  %v673 = vadd.f32 %v164, %v672
  %v674 = vpop.f32.mrf.mxu0
  %v675 = vpop.f32.mrf.mxu0
  %v676 = vadd.f32 %v164, %v675
  %v677 = vpop.f32.mrf.mxu0
  %678 = vdwg.mxu0
  %679 = vmatprep.subr.bf16.mxu0 0
  %680 = vmatpush1.bf16.msra.mxu0 %v525
  %681 = vmatprep.subr.bf16.mxu0 0
  %682 = vmatpush1.bf16.msra.mxu0 %v524
  %683 = vmatprep.subr.bf16.mxu0 0
  %684 = vmatpush1.bf16.msra.mxu0 %v523
  %685 = vmatprep.subr.bf16.mxu0 0
  %686 = vmatpush1.bf16.msra.mxu0 %v522
  %687 = vmatprep.subr.bf16.mxu0 0
  %688 = vmatpush1.bf16.msra.mxu0 %v521
  %689 = vmatprep.subr.bf16.mxu0 0
  %690 = vmatpush1.bf16.msra.mxu0 %v520
  %691 = vmatprep.subr.bf16.mxu0 0
  %692 = vmatpush1.bf16.msra.mxu0 %v519
  %693 = vmatprep.subr.bf16.mxu0 0
  %694 = vmatpush1.bf16.msra.mxu0 %v518
  %695 = vmatprep.subr.bf16.mxu0 0
  %696 = vmatpush2.bf16.msra.mxu0 %v533
  %697 = vmatprep.subr.bf16.mxu0 0
  %698 = vmatpush2.bf16.msra.mxu0 %v532
  %699 = vmatprep.subr.bf16.mxu0 0
  %700 = vmatpush2.bf16.msra.mxu0 %v531
  %701 = vmatprep.subr.bf16.mxu0 0
  %702 = vmatpush2.bf16.msra.mxu0 %v530
  %703 = vmatprep.subr.bf16.mxu0 0
  %704 = vmatpush2.bf16.msra.mxu0 %v529
  %705 = vmatprep.subr.bf16.mxu0 0
  %706 = vmatpush2.bf16.msra.mxu0 %v528
  %707 = vmatprep.subr.bf16.mxu0 0
  %708 = vmatpush2.bf16.msra.mxu0 %v527
  %709 = vmatprep.subr.bf16.mxu0 0
  %710 = vmatpush2.bf16.msra.mxu0 %v526
  %711 = vmatprep.mubr.bf16.mxu0 %v217
  %712 = vmatmul.mubr.bf16.gmra.mxu0 %v216
  %v713 = vpop.f32.mrf.mxu0
  %v714 = vadd.f32 %v665, %v713
  %v715 = vpop.f32.mrf.mxu0
  %v716 = vpop.f32.mrf.mxu0
  %v717 = vadd.f32 %v668, %v716
  %v718 = vpop.f32.mrf.mxu0
  %719 = vmatprep.mubr.bf16.mxu0 %v225
  %720 = vmatmul.mubr.bf16.gmra.mxu0 %v224
  %v721 = vpop.f32.mrf.mxu0
  %v722 = vadd.f32 %v673, %v721
  %v723 = vpop.f32.mrf.mxu0
  %v724 = vpop.f32.mrf.mxu0
  %v725 = vadd.f32 %v676, %v724
  %v726 = vpop.f32.mrf.mxu0
  %727 = vdwg.mxu0
  %728 = vmatprep.subr.bf16.mxu0 0
  %729 = vmatpush1.bf16.msra.mxu0 %v541
  %730 = vmatprep.subr.bf16.mxu0 0
  %731 = vmatpush1.bf16.msra.mxu0 %v540
  %732 = vmatprep.subr.bf16.mxu0 0
  %733 = vmatpush1.bf16.msra.mxu0 %v539
  %734 = vmatprep.subr.bf16.mxu0 0
  %735 = vmatpush1.bf16.msra.mxu0 %v538
  %736 = vmatprep.subr.bf16.mxu0 0
  %737 = vmatpush1.bf16.msra.mxu0 %v537
  %738 = vmatprep.subr.bf16.mxu0 0
  %739 = vmatpush1.bf16.msra.mxu0 %v536
  %740 = vmatprep.subr.bf16.mxu0 0
  %741 = vmatpush1.bf16.msra.mxu0 %v535
  %742 = vmatprep.subr.bf16.mxu0 0
  %743 = vmatpush1.bf16.msra.mxu0 %v534
  %744 = vmatprep.subr.bf16.mxu0 0
  %745 = vmatpush2.bf16.msra.mxu0 %v549
  %746 = vmatprep.subr.bf16.mxu0 0
  %747 = vmatpush2.bf16.msra.mxu0 %v548
  %748 = vmatprep.subr.bf16.mxu0 0
  %749 = vmatpush2.bf16.msra.mxu0 %v547
  %750 = vmatprep.subr.bf16.mxu0 0
  %751 = vmatpush2.bf16.msra.mxu0 %v546
  %752 = vmatprep.subr.bf16.mxu0 0
  %753 = vmatpush2.bf16.msra.mxu0 %v545
  %754 = vmatprep.subr.bf16.mxu0 0
  %755 = vmatpush2.bf16.msra.mxu0 %v544
  %756 = vmatprep.subr.bf16.mxu0 0
  %757 = vmatpush2.bf16.msra.mxu0 %v543
  %758 = vmatprep.subr.bf16.mxu0 0
  %759 = vmatpush2.bf16.msra.mxu0 %v542
  %760 = vmatprep.mubr.bf16.mxu0 %v219
  %761 = vmatmul.mubr.bf16.gmra.mxu0 %v218
  %v762 = vpop.f32.mrf.mxu0
  %v763 = vadd.f32 %v714, %v762
  %v764 = vpop.f32.mrf.mxu0
  %v765 = vpop.f32.mrf.mxu0
  %v766 = vadd.f32 %v717, %v765
  %v767 = vpop.f32.mrf.mxu0
  %768 = vmatprep.mubr.bf16.mxu0 %v227
  %769 = vmatmul.mubr.bf16.gmra.mxu0 %v226
  %v770 = vpop.f32.mrf.mxu0
  %v771 = vadd.f32 %v722, %v770
  %v772 = vpop.f32.mrf.mxu0
  %v773 = vpop.f32.mrf.mxu0
  %v774 = vadd.f32 %v725, %v773
  %v775 = vpop.f32.mrf.mxu0
  %776 = vdwg.mxu0
  %777 = vmatprep.subr.bf16.mxu0 0
  %778 = vmatpush1.bf16.msra.mxu0 %v557
  %779 = vmatprep.subr.bf16.mxu0 0
  %780 = vmatpush1.bf16.msra.mxu0 %v556
  %781 = vmatprep.subr.bf16.mxu0 0
  %782 = vmatpush1.bf16.msra.mxu0 %v555
  %783 = vmatprep.subr.bf16.mxu0 0
  %784 = vmatpush1.bf16.msra.mxu0 %v554
  %785 = vmatprep.subr.bf16.mxu0 0
  %786 = vmatpush1.bf16.msra.mxu0 %v553
  %787 = vmatprep.subr.bf16.mxu0 0
  %788 = vmatpush1.bf16.msra.mxu0 %v552
  %789 = vmatprep.subr.bf16.mxu0 0
  %790 = vmatpush1.bf16.msra.mxu0 %v551
  %791 = vmatprep.subr.bf16.mxu0 0
  %792 = vmatpush1.bf16.msra.mxu0 %v550
  %793 = vmatprep.subr.bf16.mxu0 0
  %794 = vmatpush2.bf16.msra.mxu0 %v565
  %795 = vmatprep.subr.bf16.mxu0 0
  %796 = vmatpush2.bf16.msra.mxu0 %v564
  %797 = vmatprep.subr.bf16.mxu0 0
  %798 = vmatpush2.bf16.msra.mxu0 %v563
  %799 = vmatprep.subr.bf16.mxu0 0
  %800 = vmatpush2.bf16.msra.mxu0 %v562
  %801 = vmatprep.subr.bf16.mxu0 0
  %802 = vmatpush2.bf16.msra.mxu0 %v561
  %803 = vmatprep.subr.bf16.mxu0 0
  %804 = vmatpush2.bf16.msra.mxu0 %v560
  %805 = vmatprep.subr.bf16.mxu0 0
  %806 = vmatpush2.bf16.msra.mxu0 %v559
  %807 = vmatprep.subr.bf16.mxu0 0
  %808 = vmatpush2.bf16.msra.mxu0 %v558
  %809 = vmatprep.mubr.bf16.mxu0 %v221
  %810 = vmatmul.mubr.bf16.gmra.mxu0 %v220
  %v811 = vpop.f32.mrf.mxu0
  %v812 = vadd.f32 %v763, %v811
  %v813 = vpop.f32.mrf.mxu0
  %v814 = vpop.f32.mrf.mxu0
  %v815 = vadd.f32 %v766, %v814
  %v816 = vpop.f32.mrf.mxu0
  %817 = vmatprep.mubr.bf16.mxu0 %v229
  %818 = vmatmul.mubr.bf16.gmra.mxu0 %v228
  %v819 = vpop.f32.mrf.mxu0
  %v820 = vadd.f32 %v771, %v819
  %v821 = vpop.f32.mrf.mxu0
  %v822 = vpop.f32.mrf.mxu0
  %v823 = vadd.f32 %v774, %v822
  %v824 = vpop.f32.mrf.mxu0
  %825 = vdwg.mxu0
  %v826 = vmax.f32 %v812, 0.0
  %v827 = vmax.f32 %v815, 0.0
  %v828 = vmax.f32 %v820, 0.0
  %v829 = vmax.f32 %v823, 0.0
  %830 = vst [vmem:[%s3] sm:$0xff] %v826
  %831 = vst [vmem:[%s3 + $0x8] sm:$0xff] %v827
  %832 = vst [vmem:[%s3 + $0x10] sm:$0xff] %v828
  %833 = vst [vmem:[%s3 + $0x18] sm:$0xff] %v829
  // Predicated region
  $region14: #{vitonhd_forward.5} parent=0 // pred_check
    _
  $region15: #{vitonhd_forward.5} parent=0 // pred_check_branch
    %835 = sbr.rel (0) target = $region17
  $region16: #{vitonhd_forward.5} parent=0 // pred_region
    _
  $region17: #{vitonhd_forward.5} parent=0 // pred_fallthru
    _
  // Predicated region
  $region18: #{vitonhd_forward.5} parent=0 // pred_check
    _
  $region19: #{vitonhd_forward.5} parent=0 // pred_check_branch
    %837 = sbr.rel (0) target = $region21
  $region20: #{vitonhd_forward.5} parent=0 // pred_region
    _
  $region21: #{vitonhd_forward.5} parent=0 // pred_fallthru
    _

// kernel: tile.13
$region0: #{tile.13}
  #allocation0 [shape = 's32[1]{0}', space=sflag, size = 0x4, scoped, tag = 'scoped memory for tile.13']
  %s0 = inlined_call_operand.vmem [shape: f32[64], index: 0, kind: input, shape index: {}]
  %s1 = inlined_call_operand.vmem [shape: f32[4,64], index: 1, kind: output, shape index: {}]
  // Predicated region
  $region2: #{tile.13} parent=0 // pred_check
    _
  $region3: #{tile.13} parent=0 // pred_check_branch
    %3 = sbr.rel (0) target = $region5
  $region4: #{tile.13} parent=0 // pred_region
    _
  $region5: #{tile.13} parent=0 // pred_fallthru
    _
  %v4 = vld [vmem:[%s0] ss:$0 sm:$0xff]
  %5 = vst [vmem:[%s1] sm:$0xf] %v4

// kernel: tile.14
$region0: #{tile.14}
  %s0 = inlined_call_operand.vmem [shape: f32[4,64], index: 0, kind: input, shape index: {}]
  %s1 = inlined_call_operand.vmem [shape: f32[1,256], index: 1, kind: output, shape index: {}]
  $region1: #{tile.14} parent=0
    #allocation0 [shape = 'u8[8192]{0}', space=vmem, size = 0x2000, scoped, tag = 'scoped mem for output reshape']
    #allocation1 [shape = 'u8[4096]{0}', space=vmem, size = 0x1000, scoped, tag = 'scoped mem for input reshape']
    %s3 = sshll.u32 1, 4
    %s4 = ssub.s32 %s3, 1
    %v5 = vld [vmem:[%s0] sm:%s4]
    %6 = vst [vmem:[#allocation1] sm:%s4] %v5
    %s7 = smov 3
    %v8 = vld [vmem:[#allocation1] ss:$2 sm:%s7]
    %vm9 = vcmask 523264
    %10 = vst.msk [vmem:[#allocation0] ss:$8 sm:$0x3] %vm9, %v8
    %s11 = scalar_lea.vmem [#allocation1], 1
    %s12 = smov 3
    %v13 = vld [vmem:[%s11] ss:$2 sm:%s12]
    %14 = vrot.lane.b32.xlu0 %v13, 64
    %v15 = vpop.permute.xlu0 %14
    %vm16 = vcmask 1048064
    %17 = vst.msk [vmem:[#allocation0] ss:$8 sm:$0x3] %vm16, %v15
    %s19 = sshll.u32 1, 1
    %s20 = ssub.s32 %s19, 1
    %v22 = vld [vmem:[#allocation0] sm:%s20]
    %s23 = sshll.u32 1, 1
    %s24 = ssub.s32 %s23, 1
    %25 = vst [vmem:[%s1] sm:%s24] %v22
    %s26 = scalar_lea.vmem [#allocation0], 8
    %v27 = vld [vmem:[%s26] sm:%s20]
    %s28 = sshll.u32 1, 1
    %s29 = ssub.s32 %s28, 1
    %s30 = scalar_lea.vmem %s1, 1
    %31 = vst [vmem:[%s30] sm:%s29] %v27

// kernel: vitonhd_forward.6
$region0: #{vitonhd_forward.6}
  #allocation0 [shape = 'u32[]', space=smem, size = 0x4, offset = 0x4, fixed_abs, tag = 'smem constant byte address 0x4 - core index']
  #allocation1 [shape = 'u32[144,128]{1,0:T(1,128)}', space=vmem, size = 0x12000, scoped, tag = 'internal scratch']
  %s0 = inlined_call_operand.vmem [shape: bf16[56,512], index: 0, kind: input, shape index: {}]
  %s1 = inlined_call_operand.vmem [shape: bf16[512,256], index: 1, kind: input, shape index: {}]
  %s2 = inlined_call_operand.vmem [shape: f32[1,256], index: 2, kind: input, shape index: {}]
  %s3 = inlined_call_operand.vmem [shape: f32[56,256], index: 3, kind: output, shape index: {}]
  %s4 = sld [smem:[#allocation0]]
  $region22: #{vitonhd_forward.6} parent=0
    _
  %s6 = ssub.s32 1, %s4
  %s7 = scalar_select 0, %s6, %s4
  // Predicated region
  $region2: #{vitonhd_forward.6} parent=0 // pred_check
    _
  $region3: #{vitonhd_forward.6} parent=0 // pred_check_branch
    %9 = sbr.rel (0) target = $region5
  $region4: #{vitonhd_forward.6} parent=0 // pred_region
    _
  $region5: #{vitonhd_forward.6} parent=0 // pred_fallthru
    _
  // Predicated region
  $region6: #{vitonhd_forward.6} parent=0 // pred_check
    _
  $region7: #{vitonhd_forward.6} parent=0 // pred_check_branch
    %11 = sbr.rel (0) target = $region9
  $region8: #{vitonhd_forward.6} parent=0 // pred_region
    _
  $region9: #{vitonhd_forward.6} parent=0 // pred_fallthru
    _
  // Predicated region
  $region10: #{vitonhd_forward.6} parent=0 // pred_check
    _
  $region11: #{vitonhd_forward.6} parent=0 // pred_check_branch
    %13 = sbr.rel (0) target = $region13
  $region12: #{vitonhd_forward.6} parent=0 // pred_region
    _
  $region13: #{vitonhd_forward.6} parent=0 // pred_fallthru
    _
  %v14 = vld [vmem:[%s0] sm:$0xff]
  %v15 = vld [vmem:[%s0 + $0x8] sm:$0xff]
  %v16 = vld [vmem:[%s0 + $0x10] sm:$0xff]
  %v17 = vld [vmem:[%s0 + $0x18] sm:$0xff]
  %v18 = vld [vmem:[%s0 + $0x20] sm:$0xff]
  %v19 = vld [vmem:[%s0 + $0x28] sm:$0xff]
  %v20 = vld [vmem:[%s0 + $0x30] sm:$0xff]
  %v21 = vld [vmem:[%s0 + $0x38] sm:$0xff]
  %v22 = vld [vmem:[%s0 + $0x40] sm:$0xff]
  %v23 = vld [vmem:[%s0 + $0x48] sm:$0xff]
  %v24 = vld [vmem:[%s0 + $0x50] sm:$0xff]
  %v25 = vld [vmem:[%s0 + $0x58] sm:$0xff]
  %v26 = vld [vmem:[%s0 + $0x60] sm:$0xff]
  %v27 = vld [vmem:[%s0 + $0x68] sm:$0xff]
  %v28 = vld [vmem:[%s1] sm:$0xff]
  %v29 = vld [vmem:[%s1 + $0x8] sm:$0xff]
  %v30 = vld [vmem:[%s1 + $0x10] sm:$0xff]
  %v31 = vld [vmem:[%s1 + $0x18] sm:$0xff]
  %v32 = vld [vmem:[%s1 + $0x20] sm:$0xff]
  %v33 = vld [vmem:[%s1 + $0x28] sm:$0xff]
  %v34 = vld [vmem:[%s1 + $0x30] sm:$0xff]
  %v35 = vld [vmem:[%s1 + $0x38] sm:$0xff]
  %v36 = vld [vmem:[%s1 + $0x40] sm:$0xff]
  %v37 = vld [vmem:[%s1 + $0x48] sm:$0xff]
  %v38 = vld [vmem:[%s1 + $0x50] sm:$0xff]
  %v39 = vld [vmem:[%s1 + $0x58] sm:$0xff]
  %v40 = vld [vmem:[%s1 + $0x60] sm:$0xff]
  %v41 = vld [vmem:[%s1 + $0x68] sm:$0xff]
  %v42 = vld [vmem:[%s1 + $0x70] sm:$0xff]
  %v43 = vld [vmem:[%s1 + $0x78] sm:$0xff]
  %v44 = vld [vmem:[%s1 + $0x80] sm:$0xff]
  %v45 = vld [vmem:[%s1 + $0x88] sm:$0xff]
  %v46 = vld [vmem:[%s1 + $0x90] sm:$0xff]
  %v47 = vld [vmem:[%s1 + $0x98] sm:$0xff]
  %v48 = vld [vmem:[%s1 + $0xa0] sm:$0xff]
  %v49 = vld [vmem:[%s1 + $0xa8] sm:$0xff]
  %v50 = vld [vmem:[%s1 + $0xb0] sm:$0xff]
  %v51 = vld [vmem:[%s1 + $0xb8] sm:$0xff]
  %v52 = vld [vmem:[%s1 + $0xc0] sm:$0xff]
  %v53 = vld [vmem:[%s1 + $0xc8] sm:$0xff]
  %v54 = vld [vmem:[%s1 + $0xd0] sm:$0xff]
  %v55 = vld [vmem:[%s1 + $0xd8] sm:$0xff]
  %v56 = vld [vmem:[%s1 + $0xe0] sm:$0xff]
  %v57 = vld [vmem:[%s1 + $0xe8] sm:$0xff]
  %v58 = vld [vmem:[%s1 + $0xf0] sm:$0xff]
  %v59 = vld [vmem:[%s1 + $0xf8] sm:$0xff]
  %v60 = vld [vmem:[%s1 + $0x100] sm:$0xff]
  %v61 = vld [vmem:[%s1 + $0x108] sm:$0xff]
  %v62 = vld [vmem:[%s1 + $0x110] sm:$0xff]
  %v63 = vld [vmem:[%s1 + $0x118] sm:$0xff]
  %v64 = vld [vmem:[%s1 + $0x120] sm:$0xff]
  %v65 = vld [vmem:[%s1 + $0x128] sm:$0xff]
  %v66 = vld [vmem:[%s1 + $0x130] sm:$0xff]
  %v67 = vld [vmem:[%s1 + $0x138] sm:$0xff]
  %v68 = vld [vmem:[%s1 + $0x140] sm:$0xff]
  %v69 = vld [vmem:[%s1 + $0x148] sm:$0xff]
  %v70 = vld [vmem:[%s1 + $0x150] sm:$0xff]
  %v71 = vld [vmem:[%s1 + $0x158] sm:$0xff]
  %v72 = vld [vmem:[%s1 + $0x160] sm:$0xff]
  %v73 = vld [vmem:[%s1 + $0x168] sm:$0xff]
  %v74 = vld [vmem:[%s1 + $0x170] sm:$0xff]
  %v75 = vld [vmem:[%s1 + $0x178] sm:$0xff]
  %v76 = vld [vmem:[%s1 + $0x180] sm:$0xff]
  %v77 = vld [vmem:[%s1 + $0x188] sm:$0xff]
  %v78 = vld [vmem:[%s1 + $0x190] sm:$0xff]
  %v79 = vld [vmem:[%s1 + $0x198] sm:$0xff]
  %v80 = vld [vmem:[%s1 + $0x1a0] sm:$0xff]
  %v81 = vld [vmem:[%s1 + $0x1a8] sm:$0xff]
  %v82 = vld [vmem:[%s1 + $0x1b0] sm:$0xff]
  %v83 = vld [vmem:[%s1 + $0x1b8] sm:$0xff]
  %v84 = vld [vmem:[%s1 + $0x1c0] sm:$0xff]
  %v85 = vld [vmem:[%s1 + $0x1c8] sm:$0xff]
  %v86 = vld [vmem:[%s1 + $0x1d0] sm:$0xff]
  %v87 = vld [vmem:[%s1 + $0x1d8] sm:$0xff]
  %v88 = vld [vmem:[%s1 + $0x1e0] sm:$0xff]
  %v89 = vld [vmem:[%s1 + $0x1e8] sm:$0xff]
  %v90 = vld [vmem:[%s1 + $0x1f0] sm:$0xff]
  %v91 = vld [vmem:[%s1 + $0x1f8] sm:$0xff]
  %v92 = vld [vmem:[%s2] sm:$0x3]
  %v94 = vlaneseq
  %v95 = vshrl.u32 %v94, 7
  %v96 = vsub.s32 0, %v95
  %v97 = vrot.slane %v92, %v96
  %v98 = vlaneseq
  %v99 = vshrl.u32 %v98, 7
  %v100 = vsub.s32 1, %v99
  %v101 = vrot.slane %v92, %v100
  %v118 = vunpack.c.l.b16 %v14
  %v119 = vunpack.c.h.b16 %v14
  %v120 = vunpack.c.l.b16 %v15
  %v121 = vunpack.c.h.b16 %v15
  %v122 = vunpack.c.l.b16 %v16
  %v123 = vunpack.c.h.b16 %v16
  %v124 = vunpack.c.l.b16 %v17
  %v125 = vunpack.c.h.b16 %v17
  %v126 = vunpack.c.l.b16 %v18
  %v127 = vunpack.c.h.b16 %v18
  %v128 = vunpack.c.l.b16 %v19
  %v129 = vunpack.c.h.b16 %v19
  %v130 = vunpack.c.l.b16 %v20
  %v131 = vunpack.c.h.b16 %v20
  %v132 = vunpack.c.l.b16 %v21
  %v133 = vunpack.c.h.b16 %v21
  %v134 = vunpack.c.l.b16 %v22
  %v135 = vunpack.c.h.b16 %v22
  %v136 = vunpack.c.l.b16 %v23
  %v137 = vunpack.c.h.b16 %v23
  %v138 = vunpack.c.l.b16 %v24
  %v139 = vunpack.c.h.b16 %v24
  %v140 = vunpack.c.l.b16 %v25
  %v141 = vunpack.c.h.b16 %v25
  %v142 = vunpack.c.l.b16 %v26
  %v143 = vunpack.c.h.b16 %v26
  %v144 = vunpack.c.l.b16 %v27
  %v145 = vunpack.c.h.b16 %v27
  %v146 = vpack.c.b16 %v122, %v118
  %v147 = vpack.c.b16 %v123, %v119
  %v148 = vpack.c.b16 %v124, %v120
  %v149 = vpack.c.b16 %v125, %v121
  %v150 = vpack.c.b16 %v130, %v126
  %v151 = vpack.c.b16 %v131, %v127
  %v152 = vpack.c.b16 %v132, %v128
  %v153 = vpack.c.b16 %v133, %v129
  %v154 = vpack.c.b16 %v138, %v134
  %v155 = vpack.c.b16 %v139, %v135
  %v156 = vpack.c.b16 %v140, %v136
  %v157 = vpack.c.b16 %v141, %v137
  %v158 = vpack.c.b16 %v142, %v142
  %v159 = vpack.c.b16 %v143, %v143
  %v160 = vpack.c.b16 %v144, %v144
  %v161 = vpack.c.b16 %v145, %v145
  %v242 = vunpack.c.l.b16 %v28
  %v243 = vunpack.c.h.b16 %v28
  %v244 = vunpack.c.l.b16 %v29
  %v245 = vunpack.c.h.b16 %v29
  %v246 = vunpack.c.l.b16 %v30
  %v247 = vunpack.c.h.b16 %v30
  %v248 = vunpack.c.l.b16 %v31
  %v249 = vunpack.c.h.b16 %v31
  %v250 = vunpack.c.l.b16 %v32
  %v251 = vunpack.c.h.b16 %v32
  %v252 = vunpack.c.l.b16 %v33
  %v253 = vunpack.c.h.b16 %v33
  %v254 = vunpack.c.l.b16 %v34
  %v255 = vunpack.c.h.b16 %v34
  %v256 = vunpack.c.l.b16 %v35
  %v257 = vunpack.c.h.b16 %v35
  %v258 = vunpack.c.l.b16 %v36
  %v259 = vunpack.c.h.b16 %v36
  %v260 = vunpack.c.l.b16 %v37
  %v261 = vunpack.c.h.b16 %v37
  %v262 = vunpack.c.l.b16 %v38
  %v263 = vunpack.c.h.b16 %v38
  %v264 = vunpack.c.l.b16 %v39
  %v265 = vunpack.c.h.b16 %v39
  %v266 = vunpack.c.l.b16 %v40
  %v267 = vunpack.c.h.b16 %v40
  %v268 = vunpack.c.l.b16 %v41
  %v269 = vunpack.c.h.b16 %v41
  %v270 = vunpack.c.l.b16 %v42
  %v271 = vunpack.c.h.b16 %v42
  %v272 = vunpack.c.l.b16 %v43
  %v273 = vunpack.c.h.b16 %v43
  %v274 = vunpack.c.l.b16 %v44
  %v275 = vunpack.c.h.b16 %v44
  %v276 = vunpack.c.l.b16 %v45
  %v277 = vunpack.c.h.b16 %v45
  %v278 = vunpack.c.l.b16 %v46
  %v279 = vunpack.c.h.b16 %v46
  %v280 = vunpack.c.l.b16 %v47
  %v281 = vunpack.c.h.b16 %v47
  %v282 = vunpack.c.l.b16 %v48
  %v283 = vunpack.c.h.b16 %v48
  %v284 = vunpack.c.l.b16 %v49
  %v285 = vunpack.c.h.b16 %v49
  %v286 = vunpack.c.l.b16 %v50
  %v287 = vunpack.c.h.b16 %v50
  %v288 = vunpack.c.l.b16 %v51
  %v289 = vunpack.c.h.b16 %v51
  %v290 = vunpack.c.l.b16 %v52
  %v291 = vunpack.c.h.b16 %v52
  %v292 = vunpack.c.l.b16 %v53
  %v293 = vunpack.c.h.b16 %v53
  %v294 = vunpack.c.l.b16 %v54
  %v295 = vunpack.c.h.b16 %v54
  %v296 = vunpack.c.l.b16 %v55
  %v297 = vunpack.c.h.b16 %v55
  %v298 = vunpack.c.l.b16 %v56
  %v299 = vunpack.c.h.b16 %v56
  %v300 = vunpack.c.l.b16 %v57
  %v301 = vunpack.c.h.b16 %v57
  %v302 = vunpack.c.l.b16 %v58
  %v303 = vunpack.c.h.b16 %v58
  %v304 = vunpack.c.l.b16 %v59
  %v305 = vunpack.c.h.b16 %v59
  %v306 = vunpack.c.l.b16 %v60
  %v307 = vunpack.c.h.b16 %v60
  %v308 = vunpack.c.l.b16 %v61
  %v309 = vunpack.c.h.b16 %v61
  %v310 = vunpack.c.l.b16 %v62
  %v311 = vunpack.c.h.b16 %v62
  %v312 = vunpack.c.l.b16 %v63
  %v313 = vunpack.c.h.b16 %v63
  %v314 = vunpack.c.l.b16 %v64
  %v315 = vunpack.c.h.b16 %v64
  %v316 = vunpack.c.l.b16 %v65
  %v317 = vunpack.c.h.b16 %v65
  %v318 = vunpack.c.l.b16 %v66
  %v319 = vunpack.c.h.b16 %v66
  %v320 = vunpack.c.l.b16 %v67
  %v321 = vunpack.c.h.b16 %v67
  %v322 = vunpack.c.l.b16 %v68
  %v323 = vunpack.c.h.b16 %v68
  %v324 = vunpack.c.l.b16 %v69
  %v325 = vunpack.c.h.b16 %v69
  %v326 = vunpack.c.l.b16 %v70
  %v327 = vunpack.c.h.b16 %v70
  %v328 = vunpack.c.l.b16 %v71
  %v329 = vunpack.c.h.b16 %v71
  %v330 = vunpack.c.l.b16 %v72
  %v331 = vunpack.c.h.b16 %v72
  %v332 = vunpack.c.l.b16 %v73
  %v333 = vunpack.c.h.b16 %v73
  %v334 = vunpack.c.l.b16 %v74
  %v335 = vunpack.c.h.b16 %v74
  %v336 = vunpack.c.l.b16 %v75
  %v337 = vunpack.c.h.b16 %v75
  %v338 = vunpack.c.l.b16 %v76
  %v339 = vunpack.c.h.b16 %v76
  %v340 = vunpack.c.l.b16 %v77
  %v341 = vunpack.c.h.b16 %v77
  %v342 = vunpack.c.l.b16 %v78
  %v343 = vunpack.c.h.b16 %v78
  %v344 = vunpack.c.l.b16 %v79
  %v345 = vunpack.c.h.b16 %v79
  %v346 = vunpack.c.l.b16 %v80
  %v347 = vunpack.c.h.b16 %v80
  %v348 = vunpack.c.l.b16 %v81
  %v349 = vunpack.c.h.b16 %v81
  %v350 = vunpack.c.l.b16 %v82
  %v351 = vunpack.c.h.b16 %v82
  %v352 = vunpack.c.l.b16 %v83
  %v353 = vunpack.c.h.b16 %v83
  %v354 = vunpack.c.l.b16 %v84
  %v355 = vunpack.c.h.b16 %v84
  %v356 = vunpack.c.l.b16 %v85
  %v357 = vunpack.c.h.b16 %v85
  %v358 = vunpack.c.l.b16 %v86
  %v359 = vunpack.c.h.b16 %v86
  %v360 = vunpack.c.l.b16 %v87
  %v361 = vunpack.c.h.b16 %v87
  %v362 = vunpack.c.l.b16 %v88
  %v363 = vunpack.c.h.b16 %v88
  %v364 = vunpack.c.l.b16 %v89
  %v365 = vunpack.c.h.b16 %v89
  %v366 = vunpack.c.l.b16 %v90
  %v367 = vunpack.c.h.b16 %v90
  %v368 = vunpack.c.l.b16 %v91
  %v369 = vunpack.c.h.b16 %v91
  %v370 = vpack.c.b16 %v244, %v242
  %v371 = vpack.c.b16 %v245, %v243
  %v372 = vpack.c.b16 %v248, %v246
  %v373 = vpack.c.b16 %v249, %v247
  %v374 = vpack.c.b16 %v252, %v250
  %v375 = vpack.c.b16 %v253, %v251
  %v376 = vpack.c.b16 %v256, %v254
  %v377 = vpack.c.b16 %v257, %v255
  %v378 = vpack.c.b16 %v260, %v258
  %v379 = vpack.c.b16 %v261, %v259
  %v380 = vpack.c.b16 %v264, %v262
  %v381 = vpack.c.b16 %v265, %v263
  %v382 = vpack.c.b16 %v268, %v266
  %v383 = vpack.c.b16 %v269, %v267
  %v384 = vpack.c.b16 %v272, %v270
  %v385 = vpack.c.b16 %v273, %v271
  %v386 = vpack.c.b16 %v276, %v274
  %v387 = vpack.c.b16 %v277, %v275
  %v388 = vpack.c.b16 %v280, %v278
  %v389 = vpack.c.b16 %v281, %v279
  %v390 = vpack.c.b16 %v284, %v282
  %v391 = vpack.c.b16 %v285, %v283
  %v392 = vpack.c.b16 %v288, %v286
  %v393 = vpack.c.b16 %v289, %v287
  %v394 = vpack.c.b16 %v292, %v290
  %v395 = vpack.c.b16 %v293, %v291
  %v396 = vpack.c.b16 %v296, %v294
  %v397 = vpack.c.b16 %v297, %v295
  %v398 = vpack.c.b16 %v300, %v298
  %v399 = vpack.c.b16 %v301, %v299
  %v400 = vpack.c.b16 %v304, %v302
  %v401 = vpack.c.b16 %v305, %v303
  %v402 = vpack.c.b16 %v308, %v306
  %v403 = vpack.c.b16 %v309, %v307
  %v404 = vpack.c.b16 %v312, %v310
  %v405 = vpack.c.b16 %v313, %v311
  %v406 = vpack.c.b16 %v316, %v314
  %v407 = vpack.c.b16 %v317, %v315
  %v408 = vpack.c.b16 %v320, %v318
  %v409 = vpack.c.b16 %v321, %v319
  %v410 = vpack.c.b16 %v324, %v322
  %v411 = vpack.c.b16 %v325, %v323
  %v412 = vpack.c.b16 %v328, %v326
  %v413 = vpack.c.b16 %v329, %v327
  %v414 = vpack.c.b16 %v332, %v330
  %v415 = vpack.c.b16 %v333, %v331
  %v416 = vpack.c.b16 %v336, %v334
  %v417 = vpack.c.b16 %v337, %v335
  %v418 = vpack.c.b16 %v340, %v338
  %v419 = vpack.c.b16 %v341, %v339
  %v420 = vpack.c.b16 %v344, %v342
  %v421 = vpack.c.b16 %v345, %v343
  %v422 = vpack.c.b16 %v348, %v346
  %v423 = vpack.c.b16 %v349, %v347
  %v424 = vpack.c.b16 %v352, %v350
  %v425 = vpack.c.b16 %v353, %v351
  %v426 = vpack.c.b16 %v356, %v354
  %v427 = vpack.c.b16 %v357, %v355
  %v428 = vpack.c.b16 %v360, %v358
  %v429 = vpack.c.b16 %v361, %v359
  %v430 = vpack.c.b16 %v364, %v362
  %v431 = vpack.c.b16 %v365, %v363
  %v432 = vpack.c.b16 %v368, %v366
  %v433 = vpack.c.b16 %v369, %v367
  %498 = vmatprep.subr.bf16.mxu0 %v385
  %499 = vmatpush1.bf16.msra.mxu0 %v384
  %500 = vmatprep.subr.bf16.mxu0 %v383
  %501 = vmatpush1.bf16.msra.mxu0 %v382
  %502 = vmatprep.subr.bf16.mxu0 %v381
  %503 = vmatpush1.bf16.msra.mxu0 %v380
  %504 = vmatprep.subr.bf16.mxu0 %v379
  %505 = vmatpush1.bf16.msra.mxu0 %v378
  %506 = vmatprep.subr.bf16.mxu0 %v377
  %507 = vmatpush1.bf16.msra.mxu0 %v376
  %508 = vmatprep.subr.bf16.mxu0 %v375
  %509 = vmatpush1.bf16.msra.mxu0 %v374
  %510 = vmatprep.subr.bf16.mxu0 %v373
  %511 = vmatpush1.bf16.msra.mxu0 %v372
  %512 = vmatprep.subr.bf16.mxu0 %v371
  %513 = vmatpush1.bf16.msra.mxu0 %v370
  %514 = vmatprep.subr.bf16.mxu0 %v401
  %515 = vmatpush2.bf16.msra.mxu0 %v400
  %516 = vmatprep.subr.bf16.mxu0 %v399
  %517 = vmatpush2.bf16.msra.mxu0 %v398
  %518 = vmatprep.subr.bf16.mxu0 %v397
  %519 = vmatpush2.bf16.msra.mxu0 %v396
  %520 = vmatprep.subr.bf16.mxu0 %v395
  %521 = vmatpush2.bf16.msra.mxu0 %v394
  %522 = vmatprep.subr.bf16.mxu0 %v393
  %523 = vmatpush2.bf16.msra.mxu0 %v392
  %524 = vmatprep.subr.bf16.mxu0 %v391
  %525 = vmatpush2.bf16.msra.mxu0 %v390
  %526 = vmatprep.subr.bf16.mxu0 %v389
  %527 = vmatpush2.bf16.msra.mxu0 %v388
  %528 = vmatprep.subr.bf16.mxu0 %v387
  %529 = vmatpush2.bf16.msra.mxu0 %v386
  %530 = vmatprep.mubr.bf16.mxu0 %v147
  %531 = vmatmul.mubr.bf16.gmra.mxu0 %v146
  %v532 = vpop.f32.mrf.mxu0
  %v533 = vadd.f32 %v97, %v532
  %v534 = vpop.f32.mrf.mxu0
  %v535 = vadd.f32 %v101, %v534
  %v536 = vpop.f32.mrf.mxu0
  %v537 = vadd.f32 %v97, %v536
  %v538 = vpop.f32.mrf.mxu0
  %v539 = vadd.f32 %v101, %v538
  %540 = vmatprep.mubr.bf16.mxu0 %v151
  %541 = vmatmul.mubr.bf16.gmra.mxu0 %v150
  %v542 = vpop.f32.mrf.mxu0
  %v543 = vadd.f32 %v97, %v542
  %v544 = vpop.f32.mrf.mxu0
  %v545 = vadd.f32 %v101, %v544
  %v546 = vpop.f32.mrf.mxu0
  %v547 = vadd.f32 %v97, %v546
  %v548 = vpop.f32.mrf.mxu0
  %v549 = vadd.f32 %v101, %v548
  %550 = vmatprep.mubr.bf16.mxu0 %v155
  %551 = vmatmul.mubr.bf16.gmra.mxu0 %v154
  %v552 = vpop.f32.mrf.mxu0
  %v553 = vadd.f32 %v97, %v552
  %v554 = vpop.f32.mrf.mxu0
  %v555 = vadd.f32 %v101, %v554
  %v556 = vpop.f32.mrf.mxu0
  %v557 = vadd.f32 %v97, %v556
  %v558 = vpop.f32.mrf.mxu0
  %v559 = vadd.f32 %v101, %v558
  %560 = vmatprep.mubr.bf16.mxu0 %v159
  %561 = vmatmul.mubr.bf16.gmra.mxu0 %v158
  %v562 = vpop.f32.mrf.mxu0
  %v563 = vadd.f32 %v97, %v562
  %v564 = vpop.f32.mrf.mxu0
  %v565 = vadd.f32 %v101, %v564
  %v566 = vpop.f32.mrf.mxu0
  %v567 = vpop.f32.mrf.mxu0
  %568 = vdwg.mxu0
  %569 = vmatprep.subr.bf16.mxu0 %v417
  %570 = vmatpush1.bf16.msra.mxu0 %v416
  %571 = vmatprep.subr.bf16.mxu0 %v415
  %572 = vmatpush1.bf16.msra.mxu0 %v414
  %573 = vmatprep.subr.bf16.mxu0 %v413
  %574 = vmatpush1.bf16.msra.mxu0 %v412
  %575 = vmatprep.subr.bf16.mxu0 %v411
  %576 = vmatpush1.bf16.msra.mxu0 %v410
  %577 = vmatprep.subr.bf16.mxu0 %v409
  %578 = vmatpush1.bf16.msra.mxu0 %v408
  %579 = vmatprep.subr.bf16.mxu0 %v407
  %580 = vmatpush1.bf16.msra.mxu0 %v406
  %581 = vmatprep.subr.bf16.mxu0 %v405
  %582 = vmatpush1.bf16.msra.mxu0 %v404
  %583 = vmatprep.subr.bf16.mxu0 %v403
  %584 = vmatpush1.bf16.msra.mxu0 %v402
  %585 = vmatprep.subr.bf16.mxu0 %v433
  %586 = vmatpush2.bf16.msra.mxu0 %v432
  %587 = vmatprep.subr.bf16.mxu0 %v431
  %588 = vmatpush2.bf16.msra.mxu0 %v430
  %589 = vmatprep.subr.bf16.mxu0 %v429
  %590 = vmatpush2.bf16.msra.mxu0 %v428
  %591 = vmatprep.subr.bf16.mxu0 %v427
  %592 = vmatpush2.bf16.msra.mxu0 %v426
  %593 = vmatprep.subr.bf16.mxu0 %v425
  %594 = vmatpush2.bf16.msra.mxu0 %v424
  %595 = vmatprep.subr.bf16.mxu0 %v423
  %596 = vmatpush2.bf16.msra.mxu0 %v422
  %597 = vmatprep.subr.bf16.mxu0 %v421
  %598 = vmatpush2.bf16.msra.mxu0 %v420
  %599 = vmatprep.subr.bf16.mxu0 %v419
  %600 = vmatpush2.bf16.msra.mxu0 %v418
  %601 = vmatprep.mubr.bf16.mxu0 %v149
  %602 = vmatmul.mubr.bf16.gmra.mxu0 %v148
  %v603 = vpop.f32.mrf.mxu0
  %v604 = vadd.f32 %v533, %v603
  %v605 = vpop.f32.mrf.mxu0
  %v606 = vadd.f32 %v535, %v605
  %v607 = vpop.f32.mrf.mxu0
  %v608 = vadd.f32 %v537, %v607
  %v609 = vpop.f32.mrf.mxu0
  %v610 = vadd.f32 %v539, %v609
  %611 = vmatprep.mubr.bf16.mxu0 %v153
  %612 = vmatmul.mubr.bf16.gmra.mxu0 %v152
  %v613 = vpop.f32.mrf.mxu0
  %v614 = vadd.f32 %v543, %v613
  %v615 = vpop.f32.mrf.mxu0
  %v616 = vadd.f32 %v545, %v615
  %v617 = vpop.f32.mrf.mxu0
  %v618 = vadd.f32 %v547, %v617
  %v619 = vpop.f32.mrf.mxu0
  %v620 = vadd.f32 %v549, %v619
  %621 = vmatprep.mubr.bf16.mxu0 %v157
  %622 = vmatmul.mubr.bf16.gmra.mxu0 %v156
  %v623 = vpop.f32.mrf.mxu0
  %v624 = vadd.f32 %v553, %v623
  %v625 = vpop.f32.mrf.mxu0
  %v626 = vadd.f32 %v555, %v625
  %v627 = vpop.f32.mrf.mxu0
  %v628 = vadd.f32 %v557, %v627
  %v629 = vpop.f32.mrf.mxu0
  %v630 = vadd.f32 %v559, %v629
  %631 = vmatprep.mubr.bf16.mxu0 %v161
  %632 = vmatmul.mubr.bf16.gmra.mxu0 %v160
  %v633 = vpop.f32.mrf.mxu0
  %v634 = vadd.f32 %v563, %v633
  %v635 = vpop.f32.mrf.mxu0
  %v636 = vadd.f32 %v565, %v635
  %v637 = vpop.f32.mrf.mxu0
  %v638 = vpop.f32.mrf.mxu0
  %639 = vdwg.mxu0
  %v640 = vmax.f32 %v604, 0.0
  %v641 = vmax.f32 %v606, 0.0
  %v642 = vmax.f32 %v608, 0.0
  %v643 = vmax.f32 %v610, 0.0
  %v644 = vmax.f32 %v614, 0.0
  %v645 = vmax.f32 %v616, 0.0
  %v646 = vmax.f32 %v618, 0.0
  %v647 = vmax.f32 %v620, 0.0
  %v648 = vmax.f32 %v624, 0.0
  %v649 = vmax.f32 %v626, 0.0
  %v650 = vmax.f32 %v628, 0.0
  %v651 = vmax.f32 %v630, 0.0
  %v652 = vmax.f32 %v634, 0.0
  %v653 = vmax.f32 %v636, 0.0
  %654 = vst [vmem:[%s3] sm:$0xff] %v640
  %655 = vst [vmem:[%s3 + $0x8] sm:$0xff] %v641
  %656 = vst [vmem:[%s3 + $0x10] sm:$0xff] %v642
  %657 = vst [vmem:[%s3 + $0x18] sm:$0xff] %v643
  %658 = vst [vmem:[%s3 + $0x20] sm:$0xff] %v644
  %659 = vst [vmem:[%s3 + $0x28] sm:$0xff] %v645
  %660 = vst [vmem:[%s3 + $0x30] sm:$0xff] %v646
  %661 = vst [vmem:[%s3 + $0x38] sm:$0xff] %v647
  %662 = vst [vmem:[%s3 + $0x40] sm:$0xff] %v648
  %663 = vst [vmem:[%s3 + $0x48] sm:$0xff] %v649
  %664 = vst [vmem:[%s3 + $0x50] sm:$0xff] %v650
  %665 = vst [vmem:[%s3 + $0x58] sm:$0xff] %v651
  %666 = vst [vmem:[%s3 + $0x60] sm:$0xff] %v652
  %667 = vst [vmem:[%s3 + $0x68] sm:$0xff] %v653
  // Predicated region
  $region14: #{vitonhd_forward.6} parent=0 // pred_check
    _
  $region15: #{vitonhd_forward.6} parent=0 // pred_check_branch
    %669 = sbr.rel (0) target = $region17
  $region16: #{vitonhd_forward.6} parent=0 // pred_region
    _
  $region17: #{vitonhd_forward.6} parent=0 // pred_fallthru
    _
  // Predicated region
  $region18: #{vitonhd_forward.6} parent=0 // pred_check
    _
  $region19: #{vitonhd_forward.6} parent=0 // pred_check_branch
    %671 = sbr.rel (0) target = $region21
  $region20: #{vitonhd_forward.6} parent=0 // pred_region
    _
  $region21: #{vitonhd_forward.6} parent=0 // pred_fallthru
    _

// kernel: tile.18
$region0: #{tile.18}
  #allocation0 [shape = 's32[1]{0}', space=sflag, size = 0x4, scoped, tag = 'scoped memory for tile.18']
  %s0 = inlined_call_operand.vmem [shape: f32[3], index: 0, kind: input, shape index: {}]
  %s1 = inlined_call_operand.vmem [shape: f32[4,3], index: 1, kind: output, shape index: {}]
  // Predicated region
  $region2: #{tile.18} parent=0 // pred_check
    _
  $region3: #{tile.18} parent=0 // pred_check_branch
    %3 = sbr.rel (0) target = $region5
  $region4: #{tile.18} parent=0 // pred_region
    _
  $region5: #{tile.18} parent=0 // pred_fallthru
    _
  %v4 = vld [vmem:[%s0] ss:$0 sm:$0xff]
  %5 = vst [vmem:[%s1] sm:$0xf] %v4

// kernel: tile.19
$region0: #{tile.19}
  %s0 = inlined_call_operand.vmem [shape: f32[4,3], index: 0, kind: input, shape index: {}]
  %s1 = inlined_call_operand.vmem [shape: f32[1,12], index: 1, kind: output, shape index: {}]
  $region1: #{tile.19} parent=0
    #allocation0 [shape = 'u8[4096]{0}', space=vmem, size = 0x1000, scoped, tag = 'scoped mem for output reshape']
    #allocation1 [shape = 'u8[4096]{0}', space=vmem, size = 0x1000, scoped, tag = 'scoped mem for input reshape']
    %s3 = sshll.u32 1, 4
    %s4 = ssub.s32 %s3, 1
    %v5 = vld [vmem:[%s0] sm:%s4]
    %6 = vst [vmem:[#allocation1] sm:%s4] %v5
    %v7 = vld [vmem:[#allocation1] sm:$0x1]
    %vm8 = vcmask 23552
    %9 = vst.msk [vmem:[#allocation0] sm:$0x1] %vm8, %v7
    %s10 = scalar_lea.vmem [#allocation1], 3
    %v11 = vld [vmem:[%s10] sm:$0x1]
    %12 = vrot.lane.b32.xlu0 %v11, 9
    %v13 = vpop.permute.xlu0 %12
    %vm14 = vcmask 97352
    %15 = vst.msk [vmem:[#allocation0] sm:$0x1] %vm14, %v13
    %s16 = scalar_lea.vmem [#allocation1], 2
    %v17 = vld [vmem:[%s16] sm:$0x1]
    %18 = vrot.lane.b32.xlu0 %v17, 6
    %v19 = vpop.permute.xlu0 %18
    %vm20 = vcmask 72752
    %21 = vst.msk [vmem:[#allocation0] sm:$0x1] %vm20, %v19
    %s22 = scalar_lea.vmem [#allocation1], 1
    %v23 = vld [vmem:[%s22] sm:$0x1]
    %24 = vrot.lane.b32.xlu0 %v23, 3
    %v25 = vpop.permute.xlu0 %24
    %vm26 = vcmask 48152
    %27 = vst.msk [vmem:[#allocation0] sm:$0x1] %vm26, %v25
    %s29 = sshll.u32 1, 1
    %s30 = ssub.s32 %s29, 1
    %v32 = vld [vmem:[#allocation0] sm:%s30]
    %s33 = sshll.u32 1, 1
    %s34 = ssub.s32 %s33, 1
    %35 = vst [vmem:[%s1] sm:%s34] %v32

// kernel: vitonhd_forward.7
$region0: #{vitonhd_forward.7}
  #allocation0 [shape = 'u32[]', space=smem, size = 0x4, offset = 0x4, fixed_abs, tag = 'smem constant byte address 0x4 - core index']
  #allocation1 [shape = 'u32[144,128]{1,0:T(1,128)}', space=vmem, size = 0x12000, scoped, tag = 'internal scratch']
  %s0 = inlined_call_operand.vmem [shape: bf16[168,256], index: 0, kind: input, shape index: {}]
  %s1 = inlined_call_operand.vmem [shape: bf16[256,128], index: 1, kind: input, shape index: {}]
  %s2 = inlined_call_operand.vmem [shape: f32[1,128], index: 2, kind: input, shape index: {}]
  %s3 = inlined_call_operand.vmem [shape: f32[168,128], index: 3, kind: output, shape index: {}]
  %s4 = sld [smem:[#allocation0]]
  $region22: #{vitonhd_forward.7} parent=0
    _
  %s6 = ssub.s32 1, %s4
  %s7 = scalar_select 0, %s6, %s4
  // Predicated region
  $region2: #{vitonhd_forward.7} parent=0 // pred_check
    _
  $region3: #{vitonhd_forward.7} parent=0 // pred_check_branch
    %9 = sbr.rel (0) target = $region5
  $region4: #{vitonhd_forward.7} parent=0 // pred_region
    _
  $region5: #{vitonhd_forward.7} parent=0 // pred_fallthru
    _
  // Predicated region
  $region6: #{vitonhd_forward.7} parent=0 // pred_check
    _
  $region7: #{vitonhd_forward.7} parent=0 // pred_check_branch
    %11 = sbr.rel (0) target = $region9
  $region8: #{vitonhd_forward.7} parent=0 // pred_region
    _
  $region9: #{vitonhd_forward.7} parent=0 // pred_fallthru
    _
  // Predicated region
  $region10: #{vitonhd_forward.7} parent=0 // pred_check
    _
  $region11: #{vitonhd_forward.7} parent=0 // pred_check_branch
    %13 = sbr.rel (0) target = $region13
  $region12: #{vitonhd_forward.7} parent=0 // pred_region
    _
  $region13: #{vitonhd_forward.7} parent=0 // pred_fallthru
    _
  %v15 = vld [vmem:[%s0] sm:$0xff]
  %v16 = vld [vmem:[%s0 + $0x8] sm:$0xff]
  %v17 = vld [vmem:[%s0 + $0x10] sm:$0xff]
  %v18 = vld [vmem:[%s0 + $0x18] sm:$0xff]
  %v19 = vld [vmem:[%s0 + $0x20] sm:$0xff]
  %v20 = vld [vmem:[%s0 + $0x28] sm:$0xff]
  %v21 = vld [vmem:[%s0 + $0x30] sm:$0xff]
  %v22 = vld [vmem:[%s0 + $0x38] sm:$0xff]
  %v23 = vld [vmem:[%s0 + $0x40] sm:$0xff]
  %v24 = vld [vmem:[%s0 + $0x48] sm:$0xff]
  %v25 = vld [vmem:[%s0 + $0x50] sm:$0xff]
  %v26 = vld [vmem:[%s0 + $0x58] sm:$0xff]
  %v27 = vld [vmem:[%s0 + $0x60] sm:$0xff]
  %v28 = vld [vmem:[%s0 + $0x68] sm:$0xff]
  %v29 = vld [vmem:[%s0 + $0x70] sm:$0xff]
  %v30 = vld [vmem:[%s0 + $0x78] sm:$0xff]
  %v31 = vld [vmem:[%s0 + $0x80] sm:$0xff]
  %v32 = vld [vmem:[%s0 + $0x88] sm:$0xff]
  %v33 = vld [vmem:[%s0 + $0x90] sm:$0xff]
  %v34 = vld [vmem:[%s0 + $0x98] sm:$0xff]
  %v35 = vld [vmem:[%s0 + $0xa0] sm:$0xff]
  %v36 = vld [vmem:[%s1] sm:$0xf]
  %v37 = vld [vmem:[%s1 + $0x4] sm:$0xf]
  %v38 = vld [vmem:[%s1 + $0x8] sm:$0xf]
  %v39 = vld [vmem:[%s1 + $0xc] sm:$0xf]
  %v40 = vld [vmem:[%s1 + $0x10] sm:$0xf]
  %v41 = vld [vmem:[%s1 + $0x14] sm:$0xf]
  %v42 = vld [vmem:[%s1 + $0x18] sm:$0xf]
  %v43 = vld [vmem:[%s1 + $0x1c] sm:$0xf]
  %v44 = vld [vmem:[%s1 + $0x20] sm:$0xf]
  %v45 = vld [vmem:[%s1 + $0x24] sm:$0xf]
  %v46 = vld [vmem:[%s1 + $0x28] sm:$0xf]
  %v47 = vld [vmem:[%s1 + $0x2c] sm:$0xf]
  %v48 = vld [vmem:[%s1 + $0x30] sm:$0xf]
  %v49 = vld [vmem:[%s1 + $0x34] sm:$0xf]
  %v50 = vld [vmem:[%s1 + $0x38] sm:$0xf]
  %v51 = vld [vmem:[%s1 + $0x3c] sm:$0xf]
  %v52 = vld [vmem:[%s1 + $0x40] sm:$0xf]
  %v53 = vld [vmem:[%s1 + $0x44] sm:$0xf]
  %v54 = vld [vmem:[%s1 + $0x48] sm:$0xf]
  %v55 = vld [vmem:[%s1 + $0x4c] sm:$0xf]
  %v56 = vld [vmem:[%s1 + $0x50] sm:$0xf]
  %v57 = vld [vmem:[%s1 + $0x54] sm:$0xf]
  %v58 = vld [vmem:[%s1 + $0x58] sm:$0xf]
  %v59 = vld [vmem:[%s1 + $0x5c] sm:$0xf]
  %v60 = vld [vmem:[%s1 + $0x60] sm:$0xf]
  %v61 = vld [vmem:[%s1 + $0x64] sm:$0xf]
  %v62 = vld [vmem:[%s1 + $0x68] sm:$0xf]
  %v63 = vld [vmem:[%s1 + $0x6c] sm:$0xf]
  %v64 = vld [vmem:[%s1 + $0x70] sm:$0xf]
  %v65 = vld [vmem:[%s1 + $0x74] sm:$0xf]
  %v66 = vld [vmem:[%s1 + $0x78] sm:$0xf]
  %v67 = vld [vmem:[%s1 + $0x7c] sm:$0xf]
  %v68 = vld [vmem:[%s2] sm:$0x1]
  %v70 = vlaneseq
  %v71 = vshrl.u32 %v70, 7
  %v72 = vsub.s32 0, %v71
  %v73 = vrot.slane %v68, %v72
  %v96 = vunpack.c.l.b16 %v15
  %v97 = vunpack.c.h.b16 %v15
  %v98 = vunpack.c.l.b16 %v16
  %v99 = vunpack.c.h.b16 %v16
  %v100 = vunpack.c.l.b16 %v17
  %v101 = vunpack.c.h.b16 %v17
  %v102 = vunpack.c.l.b16 %v18
  %v103 = vunpack.c.h.b16 %v18
  %v104 = vunpack.c.l.b16 %v19
  %v105 = vunpack.c.h.b16 %v19
  %v106 = vunpack.c.l.b16 %v20
  %v107 = vunpack.c.h.b16 %v20
  %v108 = vunpack.c.l.b16 %v21
  %v109 = vunpack.c.h.b16 %v21
  %v110 = vunpack.c.l.b16 %v22
  %v111 = vunpack.c.h.b16 %v22
  %v112 = vunpack.c.l.b16 %v23
  %v113 = vunpack.c.h.b16 %v23
  %v114 = vunpack.c.l.b16 %v24
  %v115 = vunpack.c.h.b16 %v24
  %v116 = vunpack.c.l.b16 %v25
  %v117 = vunpack.c.h.b16 %v25
  %v118 = vunpack.c.l.b16 %v26
  %v119 = vunpack.c.h.b16 %v26
  %v120 = vunpack.c.l.b16 %v27
  %v121 = vunpack.c.h.b16 %v27
  %v122 = vunpack.c.l.b16 %v28
  %v123 = vunpack.c.h.b16 %v28
  %v124 = vunpack.c.l.b16 %v29
  %v125 = vunpack.c.h.b16 %v29
  %v126 = vunpack.c.l.b16 %v30
  %v127 = vunpack.c.h.b16 %v30
  %v128 = vunpack.c.l.b16 %v31
  %v129 = vunpack.c.h.b16 %v31
  %v130 = vunpack.c.l.b16 %v32
  %v131 = vunpack.c.h.b16 %v32
  %v132 = vunpack.c.l.b16 %v33
  %v133 = vunpack.c.h.b16 %v33
  %v134 = vunpack.c.l.b16 %v34
  %v135 = vunpack.c.h.b16 %v34
  %v136 = vunpack.c.l.b16 %v35
  %v137 = vunpack.c.h.b16 %v35
  %v138 = vpack.c.b16 %v98, %v96
  %v139 = vpack.c.b16 %v99, %v97
  %v140 = vpack.c.b16 %v102, %v100
  %v141 = vpack.c.b16 %v103, %v101
  %v142 = vpack.c.b16 %v106, %v104
  %v143 = vpack.c.b16 %v107, %v105
  %v144 = vpack.c.b16 %v110, %v108
  %v145 = vpack.c.b16 %v111, %v109
  %v146 = vpack.c.b16 %v114, %v112
  %v147 = vpack.c.b16 %v115, %v113
  %v148 = vpack.c.b16 %v118, %v116
  %v149 = vpack.c.b16 %v119, %v117
  %v150 = vpack.c.b16 %v122, %v120
  %v151 = vpack.c.b16 %v123, %v121
  %v152 = vpack.c.b16 %v126, %v124
  %v153 = vpack.c.b16 %v127, %v125
  %v154 = vpack.c.b16 %v130, %v128
  %v155 = vpack.c.b16 %v131, %v129
  %v156 = vpack.c.b16 %v134, %v132
  %v157 = vpack.c.b16 %v135, %v133
  %v158 = vpack.c.b16 %v136, %v136
  %v159 = vpack.c.b16 %v137, %v137
  %v214 = vunpack.c.l.b16 %v36
  %v215 = vunpack.c.l.b16 %v37
  %v216 = vunpack.c.l.b16 %v38
  %v217 = vunpack.c.l.b16 %v39
  %v218 = vunpack.c.l.b16 %v40
  %v219 = vunpack.c.l.b16 %v41
  %v220 = vunpack.c.l.b16 %v42
  %v221 = vunpack.c.l.b16 %v43
  %v222 = vunpack.c.l.b16 %v44
  %v223 = vunpack.c.l.b16 %v45
  %v224 = vunpack.c.l.b16 %v46
  %v225 = vunpack.c.l.b16 %v47
  %v226 = vunpack.c.l.b16 %v48
  %v227 = vunpack.c.l.b16 %v49
  %v228 = vunpack.c.l.b16 %v50
  %v229 = vunpack.c.l.b16 %v51
  %v230 = vunpack.c.l.b16 %v52
  %v231 = vunpack.c.l.b16 %v53
  %v232 = vunpack.c.l.b16 %v54
  %v233 = vunpack.c.l.b16 %v55
  %v234 = vunpack.c.l.b16 %v56
  %v235 = vunpack.c.l.b16 %v57
  %v236 = vunpack.c.l.b16 %v58
  %v237 = vunpack.c.l.b16 %v59
  %v238 = vunpack.c.l.b16 %v60
  %v239 = vunpack.c.l.b16 %v61
  %v240 = vunpack.c.l.b16 %v62
  %v241 = vunpack.c.l.b16 %v63
  %v242 = vunpack.c.l.b16 %v64
  %v243 = vunpack.c.l.b16 %v65
  %v244 = vunpack.c.l.b16 %v66
  %v245 = vunpack.c.l.b16 %v67
  %v246 = vpack.c.b16 %v215, %v214
  %v247 = vpack.c.b16 %v217, %v216
  %v248 = vpack.c.b16 %v219, %v218
  %v249 = vpack.c.b16 %v221, %v220
  %v250 = vpack.c.b16 %v223, %v222
  %v251 = vpack.c.b16 %v225, %v224
  %v252 = vpack.c.b16 %v227, %v226
  %v253 = vpack.c.b16 %v229, %v228
  %v254 = vpack.c.b16 %v231, %v230
  %v255 = vpack.c.b16 %v233, %v232
  %v256 = vpack.c.b16 %v235, %v234
  %v257 = vpack.c.b16 %v237, %v236
  %v258 = vpack.c.b16 %v239, %v238
  %v259 = vpack.c.b16 %v241, %v240
  %v260 = vpack.c.b16 %v243, %v242
  %v261 = vpack.c.b16 %v245, %v244
  %278 = vmatprep.subr.bf16.mxu0 0
  %279 = vmatpush1.bf16.msra.mxu0 %v253
  %280 = vmatprep.subr.bf16.mxu0 0
  %281 = vmatpush1.bf16.msra.mxu0 %v252
  %282 = vmatprep.subr.bf16.mxu0 0
  %283 = vmatpush1.bf16.msra.mxu0 %v251
  %284 = vmatprep.subr.bf16.mxu0 0
  %285 = vmatpush1.bf16.msra.mxu0 %v250
  %286 = vmatprep.subr.bf16.mxu0 0
  %287 = vmatpush1.bf16.msra.mxu0 %v249
  %288 = vmatprep.subr.bf16.mxu0 0
  %289 = vmatpush1.bf16.msra.mxu0 %v248
  %290 = vmatprep.subr.bf16.mxu0 0
  %291 = vmatpush1.bf16.msra.mxu0 %v247
  %292 = vmatprep.subr.bf16.mxu0 0
  %293 = vmatpush1.bf16.msra.mxu0 %v246
  %294 = vmatprep.subr.bf16.mxu0 0
  %295 = vmatpush2.bf16.msra.mxu0 %v261
  %296 = vmatprep.subr.bf16.mxu0 0
  %297 = vmatpush2.bf16.msra.mxu0 %v260
  %298 = vmatprep.subr.bf16.mxu0 0
  %299 = vmatpush2.bf16.msra.mxu0 %v259
  %300 = vmatprep.subr.bf16.mxu0 0
  %301 = vmatpush2.bf16.msra.mxu0 %v258
  %302 = vmatprep.subr.bf16.mxu0 0
  %303 = vmatpush2.bf16.msra.mxu0 %v257
  %304 = vmatprep.subr.bf16.mxu0 0
  %305 = vmatpush2.bf16.msra.mxu0 %v256
  %306 = vmatprep.subr.bf16.mxu0 0
  %307 = vmatpush2.bf16.msra.mxu0 %v255
  %308 = vmatprep.subr.bf16.mxu0 0
  %309 = vmatpush2.bf16.msra.mxu0 %v254
  %310 = vmatprep.mubr.bf16.mxu0 %v139
  %311 = vmatmul.mubr.bf16.gmra.mxu0 %v138
  %v312 = vpop.f32.mrf.mxu0
  %v313 = vadd.f32 %v73, %v312
  %v314 = vpop.f32.mrf.mxu0
  %v315 = vpop.f32.mrf.mxu0
  %v316 = vadd.f32 %v73, %v315
  %v317 = vpop.f32.mrf.mxu0
  %318 = vmatprep.mubr.bf16.mxu0 %v141
  %319 = vmatmul.mubr.bf16.gmra.mxu0 %v140
  %v320 = vpop.f32.mrf.mxu0
  %v321 = vadd.f32 %v73, %v320
  %v322 = vpop.f32.mrf.mxu0
  %v323 = vpop.f32.mrf.mxu0
  %v324 = vadd.f32 %v73, %v323
  %v325 = vpop.f32.mrf.mxu0
  %326 = vmatprep.mubr.bf16.mxu0 %v143
  %327 = vmatmul.mubr.bf16.gmra.mxu0 %v142
  %v328 = vpop.f32.mrf.mxu0
  %v329 = vadd.f32 %v73, %v328
  %v330 = vpop.f32.mrf.mxu0
  %v331 = vpop.f32.mrf.mxu0
  %v332 = vadd.f32 %v73, %v331
  %v333 = vpop.f32.mrf.mxu0
  %334 = vmatprep.mubr.bf16.mxu0 %v145
  %335 = vmatmul.mubr.bf16.gmra.mxu0 %v144
  %v336 = vpop.f32.mrf.mxu0
  %v337 = vadd.f32 %v73, %v336
  %v338 = vpop.f32.mrf.mxu0
  %v339 = vpop.f32.mrf.mxu0
  %v340 = vadd.f32 %v73, %v339
  %v341 = vpop.f32.mrf.mxu0
  %342 = vmatprep.mubr.bf16.mxu0 %v147
  %343 = vmatmul.mubr.bf16.gmra.mxu0 %v146
  %v344 = vpop.f32.mrf.mxu0
  %v345 = vadd.f32 %v73, %v344
  %v346 = vpop.f32.mrf.mxu0
  %v347 = vpop.f32.mrf.mxu0
  %v348 = vadd.f32 %v73, %v347
  %v349 = vpop.f32.mrf.mxu0
  %350 = vmatprep.mubr.bf16.mxu0 %v149
  %351 = vmatmul.mubr.bf16.gmra.mxu0 %v148
  %v352 = vpop.f32.mrf.mxu0
  %v353 = vadd.f32 %v73, %v352
  %v354 = vpop.f32.mrf.mxu0
  %v355 = vpop.f32.mrf.mxu0
  %v356 = vadd.f32 %v73, %v355
  %v357 = vpop.f32.mrf.mxu0
  %358 = vmatprep.mubr.bf16.mxu0 %v151
  %359 = vmatmul.mubr.bf16.gmra.mxu0 %v150
  %v360 = vpop.f32.mrf.mxu0
  %v361 = vadd.f32 %v73, %v360
  %v362 = vpop.f32.mrf.mxu0
  %v363 = vpop.f32.mrf.mxu0
  %v364 = vadd.f32 %v73, %v363
  %v365 = vpop.f32.mrf.mxu0
  %366 = vmatprep.mubr.bf16.mxu0 %v153
  %367 = vmatmul.mubr.bf16.gmra.mxu0 %v152
  %v368 = vpop.f32.mrf.mxu0
  %v369 = vadd.f32 %v73, %v368
  %v370 = vpop.f32.mrf.mxu0
  %v371 = vpop.f32.mrf.mxu0
  %v372 = vadd.f32 %v73, %v371
  %v373 = vpop.f32.mrf.mxu0
  %374 = vmatprep.mubr.bf16.mxu0 %v155
  %375 = vmatmul.mubr.bf16.gmra.mxu0 %v154
  %v376 = vpop.f32.mrf.mxu0
  %v377 = vadd.f32 %v73, %v376
  %v378 = vpop.f32.mrf.mxu0
  %v379 = vpop.f32.mrf.mxu0
  %v380 = vadd.f32 %v73, %v379
  %v381 = vpop.f32.mrf.mxu0
  %382 = vmatprep.mubr.bf16.mxu0 %v157
  %383 = vmatmul.mubr.bf16.gmra.mxu0 %v156
  %v384 = vpop.f32.mrf.mxu0
  %v385 = vadd.f32 %v73, %v384
  %v386 = vpop.f32.mrf.mxu0
  %v387 = vpop.f32.mrf.mxu0
  %v388 = vadd.f32 %v73, %v387
  %v389 = vpop.f32.mrf.mxu0
  %390 = vmatprep.mubr.bf16.mxu0 %v159
  %391 = vmatmul.mubr.bf16.gmra.mxu0 %v158
  %v392 = vpop.f32.mrf.mxu0
  %v393 = vadd.f32 %v73, %v392
  %v394 = vpop.f32.mrf.mxu0
  %v395 = vpop.f32.mrf.mxu0
  %v396 = vpop.f32.mrf.mxu0
  %397 = vdwg.mxu0
  %v398 = vxor.u32 %v313, 2147483648
  %v399 = vxor.u32 %v316, 2147483648
  %v400 = vxor.u32 %v321, 2147483648
  %v401 = vxor.u32 %v324, 2147483648
  %v402 = vxor.u32 %v329, 2147483648
  %v403 = vxor.u32 %v332, 2147483648
  %v404 = vxor.u32 %v337, 2147483648
  %v405 = vxor.u32 %v340, 2147483648
  %v406 = vxor.u32 %v345, 2147483648
  %v407 = vxor.u32 %v348, 2147483648
  %v408 = vxor.u32 %v353, 2147483648
  %v409 = vxor.u32 %v356, 2147483648
  %v410 = vxor.u32 %v361, 2147483648
  %v411 = vxor.u32 %v364, 2147483648
  %v412 = vxor.u32 %v369, 2147483648
  %v413 = vxor.u32 %v372, 2147483648
  %v414 = vxor.u32 %v377, 2147483648
  %v415 = vxor.u32 %v380, 2147483648
  %v416 = vxor.u32 %v385, 2147483648
  %v417 = vxor.u32 %v388, 2147483648
  %v418 = vxor.u32 %v393, 2147483648
  %v419 = vmul.f32 %v398, 1.442695
  %v420 = vpow.pop %v419
  %v421 = vmul.f32 %v399, 1.442695
  %v422 = vpow.pop %v421
  %v423 = vmul.f32 %v400, 1.442695
  %v424 = vpow.pop %v423
  %v425 = vmul.f32 %v401, 1.442695
  %v426 = vpow.pop %v425
  %v427 = vmul.f32 %v402, 1.442695
  %v428 = vpow.pop %v427
  %v429 = vmul.f32 %v403, 1.442695
  %v430 = vpow.pop %v429
  %v431 = vmul.f32 %v404, 1.442695
  %v432 = vpow.pop %v431
  %v433 = vmul.f32 %v405, 1.442695
  %v434 = vpow.pop %v433
  %v435 = vmul.f32 %v406, 1.442695
  %v436 = vpow.pop %v435
  %v437 = vmul.f32 %v407, 1.442695
  %v438 = vpow.pop %v437
  %v439 = vmul.f32 %v408, 1.442695
  %v440 = vpow.pop %v439
  %v441 = vmul.f32 %v409, 1.442695
  %v442 = vpow.pop %v441
  %v443 = vmul.f32 %v410, 1.442695
  %v444 = vpow.pop %v443
  %v445 = vmul.f32 %v411, 1.442695
  %v446 = vpow.pop %v445
  %v447 = vmul.f32 %v412, 1.442695
  %v448 = vpow.pop %v447
  %v449 = vmul.f32 %v413, 1.442695
  %v450 = vpow.pop %v449
  %v451 = vmul.f32 %v414, 1.442695
  %v452 = vpow.pop %v451
  %v453 = vmul.f32 %v415, 1.442695
  %v454 = vpow.pop %v453
  %v455 = vmul.f32 %v416, 1.442695
  %v456 = vpow.pop %v455
  %v457 = vmul.f32 %v417, 1.442695
  %v458 = vpow.pop %v457
  %v459 = vmul.f32 %v418, 1.442695
  %v460 = vpow.pop %v459
  %v461 = vadd.f32 %v420, 1.0
  %v462 = vadd.f32 %v422, 1.0
  %v463 = vadd.f32 %v424, 1.0
  %v464 = vadd.f32 %v426, 1.0
  %v465 = vadd.f32 %v428, 1.0
  %v466 = vadd.f32 %v430, 1.0
  %v467 = vadd.f32 %v432, 1.0
  %v468 = vadd.f32 %v434, 1.0
  %v469 = vadd.f32 %v436, 1.0
  %v470 = vadd.f32 %v438, 1.0
  %v471 = vadd.f32 %v440, 1.0
  %v472 = vadd.f32 %v442, 1.0
  %v473 = vadd.f32 %v444, 1.0
  %v474 = vadd.f32 %v446, 1.0
  %v475 = vadd.f32 %v448, 1.0
  %v476 = vadd.f32 %v450, 1.0
  %v477 = vadd.f32 %v452, 1.0
  %v478 = vadd.f32 %v454, 1.0
  %v479 = vadd.f32 %v456, 1.0
  %v480 = vadd.f32 %v458, 1.0
  %v481 = vadd.f32 %v460, 1.0
  %v482 = vrcp.pop %v461
  %v483 = vmul.f32 1.0, %v482
  %v484 = vrcp.pop %v462
  %v485 = vmul.f32 1.0, %v484
  %v486 = vrcp.pop %v463
  %v487 = vmul.f32 1.0, %v486
  %v488 = vrcp.pop %v464
  %v489 = vmul.f32 1.0, %v488
  %v490 = vrcp.pop %v465
  %v491 = vmul.f32 1.0, %v490
  %v492 = vrcp.pop %v466
  %v493 = vmul.f32 1.0, %v492
  %v494 = vrcp.pop %v467
  %v495 = vmul.f32 1.0, %v494
  %v496 = vrcp.pop %v468
  %v497 = vmul.f32 1.0, %v496
  %v498 = vrcp.pop %v469
  %v499 = vmul.f32 1.0, %v498
  %v500 = vrcp.pop %v470
  %v501 = vmul.f32 1.0, %v500
  %v502 = vrcp.pop %v471
  %v503 = vmul.f32 1.0, %v502
  %v504 = vrcp.pop %v472
  %v505 = vmul.f32 1.0, %v504
  %v506 = vrcp.pop %v473
  %v507 = vmul.f32 1.0, %v506
  %v508 = vrcp.pop %v474
  %v509 = vmul.f32 1.0, %v508
  %v510 = vrcp.pop %v475
  %v511 = vmul.f32 1.0, %v510
  %v512 = vrcp.pop %v476
  %v513 = vmul.f32 1.0, %v512
  %v514 = vrcp.pop %v477
  %v515 = vmul.f32 1.0, %v514
  %v516 = vrcp.pop %v478
  %v517 = vmul.f32 1.0, %v516
  %v518 = vrcp.pop %v479
  %v519 = vmul.f32 1.0, %v518
  %v520 = vrcp.pop %v480
  %v521 = vmul.f32 1.0, %v520
  %v522 = vrcp.pop %v481
  %v523 = vmul.f32 1.0, %v522
  %524 = vst [vmem:[%s3] sm:$0xff] %v483
  %525 = vst [vmem:[%s3 + $0x8] sm:$0xff] %v485
  %526 = vst [vmem:[%s3 + $0x10] sm:$0xff] %v487
  %527 = vst [vmem:[%s3 + $0x18] sm:$0xff] %v489
  %528 = vst [vmem:[%s3 + $0x20] sm:$0xff] %v491
  %529 = vst [vmem:[%s3 + $0x28] sm:$0xff] %v493
  %530 = vst [vmem:[%s3 + $0x30] sm:$0xff] %v495
  %531 = vst [vmem:[%s3 + $0x38] sm:$0xff] %v497
  %532 = vst [vmem:[%s3 + $0x40] sm:$0xff] %v499
  %533 = vst [vmem:[%s3 + $0x48] sm:$0xff] %v501
  %534 = vst [vmem:[%s3 + $0x50] sm:$0xff] %v503
  %535 = vst [vmem:[%s3 + $0x58] sm:$0xff] %v505
  %536 = vst [vmem:[%s3 + $0x60] sm:$0xff] %v507
  %537 = vst [vmem:[%s3 + $0x68] sm:$0xff] %v509
  %538 = vst [vmem:[%s3 + $0x70] sm:$0xff] %v511
  %539 = vst [vmem:[%s3 + $0x78] sm:$0xff] %v513
  %540 = vst [vmem:[%s3 + $0x80] sm:$0xff] %v515
  %541 = vst [vmem:[%s3 + $0x88] sm:$0xff] %v517
  %542 = vst [vmem:[%s3 + $0x90] sm:$0xff] %v519
  %543 = vst [vmem:[%s3 + $0x98] sm:$0xff] %v521
  %544 = vst [vmem:[%s3 + $0xa0] sm:$0xff] %v523
  // Predicated region
  $region14: #{vitonhd_forward.7} parent=0 // pred_check
    _
  $region15: #{vitonhd_forward.7} parent=0 // pred_check_branch
    %546 = sbr.rel (0) target = $region17
  $region16: #{vitonhd_forward.7} parent=0 // pred_region
    _
  $region17: #{vitonhd_forward.7} parent=0 // pred_fallthru
    _
  // Predicated region
  $region18: #{vitonhd_forward.7} parent=0 // pred_check
    _
  $region19: #{vitonhd_forward.7} parent=0 // pred_check_branch
    %548 = sbr.rel (0) target = $region21
  $region20: #{vitonhd_forward.7} parent=0 // pred_region
    _
  $region21: #{vitonhd_forward.7} parent=0 // pred_fallthru
    _

</llo_original>
